<compile_context>
chip_gen: v7x
topology: tpu7x:2x2x1
jax: 0.10.0
libtpu: 0.0.40
codegen_flags: <defaults>
</compile_context>

<pallas_src>
import functools
import math

import jax
import jax.numpy as jnp
from jax import lax
from jax.experimental import pallas as pl
from jax.experimental.pallas import tpu as pltpu


def _flash_fwd_kernel(q_ref, k_ref, v_ref, o_ref, m_sc, l_sc, acc_sc, *, scale):
    """Online-softmax attention forward over one (q-block, k-block) grid step.

    q_ref: (TQ, Dqk), k_ref: (TK, Dqk), v_ref: (TK, Dv), o_ref: (TQ, Dv)
    scratch: m_sc (TQ,1) f32, l_sc (TQ,1) f32, acc_sc (TQ,Dv) f32
    """
    ki = pl.program_id(2)

    # Init running max / sum / accumulator at the first K block.
    @pl.when(ki == 0)
    def _():
        m_sc[...] = jnp.full_like(m_sc, -jnp.inf)
        l_sc[...] = jnp.zeros_like(l_sc)
        acc_sc[...] = jnp.zeros_like(acc_sc)

    # Fold the 1/sqrt(Dqk) scale into Q (TQ*Dqk mults instead of TQ*TK) and
    # feed the MXU bf16 operands with f32 accumulation.
    q = (q_ref[...] * scale).astype(jnp.bfloat16)
    k = k_ref[...].astype(jnp.bfloat16)

    # Scores: contract the last dims directly (no explicit K transpose /
    # XLU vxpose + VMEM copy).
    s = lax.dot_general(
        q, k,
        dimension_numbers=(((1,), (1,)), ((), ())),
        preferred_element_type=jnp.float32,
    )

    # Online (running) softmax update.
    m_prev = m_sc[...]
    m_new = jnp.maximum(m_prev, jnp.max(s, axis=-1, keepdims=True))
    alpha = jnp.exp(m_prev - m_new)
    p = jnp.exp(s - m_new)

    l_sc[...] = alpha * l_sc[...] + jnp.sum(p, axis=-1, keepdims=True)
    acc_sc[...] = alpha * acc_sc[...] + jnp.dot(
        p.astype(jnp.bfloat16),
        v_ref[...].astype(jnp.bfloat16),
        preferred_element_type=jnp.float32,
    )
    m_sc[...] = m_new

    # Deferred normalization: one reciprocal per row on the EUP, multiply on
    # the output tile instead of dividing the S x S score matrix.
    @pl.when(ki == pl.num_programs(2) - 1)
    def _():
        inv_l = pl.reciprocal(l_sc[...], approx=True)
        o_ref[...] = (acc_sc[...] * inv_l).astype(o_ref.dtype)


def _pick_tile(s, cap):
    """Largest tile <= cap that divides s and is a multiple of 8 (else full s)."""
    if s <= cap:
        return s
    t = (cap // 8) * 8
    while t >= 8:
        if s % t == 0:
            return t
        t -= 8
    return s


def sdpa_pallas(q, k, v, *, tq_cap=256, tk_cap=256):
    """q: [B, S, Dqk], k: [B, S, Dqk], v: [B, S, Dv] -> [B, S, Dv]."""
    B, S, Dqk = q.shape
    Dv = v.shape[-1]
    assert k.shape == (B, S, Dqk)
    assert v.shape == (B, S, Dv)

    tq = _pick_tile(S, tq_cap)
    tk = _pick_tile(S, tk_cap)
    scale = 1.0 / math.sqrt(Dqk)

    kernel = functools.partial(_flash_fwd_kernel, scale=scale)

    itemsize = jnp.dtype(q.dtype).itemsize
    cost = pl.CostEstimate(
        flops=2 * B * S * S * (Dqk + Dv),
        transcendentals=B * S * S,
        bytes_accessed=itemsize * (q.size + k.size + v.size + B * S * Dv),
    )

    return pl.pallas_call(
        kernel,
        out_shape=jax.ShapeDtypeStruct((B, S, Dv), q.dtype),
        grid_spec=pltpu.PrefetchScalarGridSpec(
            num_scalar_prefetch=0,
            grid=(B, S // tq, S // tk),
            in_specs=[
                pl.BlockSpec((None, tq, Dqk), lambda b, qi, ki: (b, qi, 0)),
                pl.BlockSpec((None, tk, Dqk), lambda b, qi, ki: (b, ki, 0)),
                pl.BlockSpec((None, tk, Dv), lambda b, qi, ki: (b, ki, 0)),
            ],
            out_specs=pl.BlockSpec((None, tq, Dv), lambda b, qi, ki: (b, qi, 0)),
            scratch_shapes=[
                pltpu.VMEM((tq, 1), jnp.float32),   # running max
                pltpu.VMEM((tq, 1), jnp.float32),   # running denom
                pltpu.VMEM((tq, Dv), jnp.float32),  # output accumulator
            ],
        ),
        compiler_params=pltpu.CompilerParams(
            dimension_semantics=("parallel", "parallel", "arbitrary"),
            vmem_limit_bytes=32 * 1024 * 1024,
        ),
        cost_estimate=cost,
    )(q, k, v)


def sdpa_ref(q, k, v):
    scale = 1.0 / math.sqrt(q.shape[-1])
    s = jnp.einsum("bqd,bkd->bqk", q, k) * scale
    w = jax.nn.softmax(s, axis=-1)
    return jnp.einsum("bqk,bkd->bqd", w, v)


if __name__ == "__main__":
    # Small shapes consistent with the module's forward (q/k share the feature
    # dim, v has its own feature dim); large enough to exercise q and k tiling.
    B, S, Dqk, Dv = 2, 512, 128, 256

    key = jax.random.PRNGKey(0)
    kq, kk, kv = jax.random.split(key, 3)
    q = jax.random.normal(kq, (B, S, Dqk), dtype=jnp.float32)
    k = jax.random.normal(kk, (B, S, Dqk), dtype=jnp.float32)
    v = jax.random.normal(kv, (B, S, Dv), dtype=jnp.float32)

    out = jax.block_until_ready(sdpa_pallas(q, k, v))
    ref = jax.block_until_ready(sdpa_ref(q, k, v))

    assert out.shape == (B, S, Dv)
    # bf16 MXU operands + approx reciprocal => looser tolerance than pure f32.
    assert jnp.allclose(out, ref, atol=2e-2, rtol=2e-2), (
        float(jnp.max(jnp.abs(out - ref)))
    )

    print("KERNEL_OK")
</pallas_src>

<mosaic_0001>
module attributes {stable_mosaic.version = 11 : i64} {
  func.func @_flash_fwd_kernel(%arg0: i32, %arg1: i32, %arg2: i32, %arg3: memref<1x256x128xf32, #tpu.memory_space<vmem>>, %arg4: memref<1x256x128xf32, #tpu.memory_space<vmem>>, %arg5: memref<1x256x256xf32, #tpu.memory_space<vmem>>, %arg6: memref<1x256x256xf32, #tpu.memory_space<vmem>>, %arg7: memref<256x1xf32, #tpu.memory_space<vmem>>, %arg8: memref<256x1xf32, #tpu.memory_space<vmem>>, %arg9: memref<256x256xf32, #tpu.memory_space<vmem>>) attributes {dimension_semantics = [#tpu.dimension_semantics<parallel>, #tpu.dimension_semantics<parallel>, #tpu.dimension_semantics<arbitrary>], iteration_bounds = array<i64: 2, 2, 2>, scalar_prefetch = 0 : i64, scratch_operands = 3 : i64, tpu.core_type = #tpu.core_type<tc>, window_params = [{transform_indices = @transform_0, window_bounds = array<i64: 1, 256, 128>}, {transform_indices = @transform_1, window_bounds = array<i64: 1, 256, 128>}, {transform_indices = @transform_2, window_bounds = array<i64: 1, 256, 256>}, {transform_indices = @transform_3, window_bounds = array<i64: 1, 256, 256>}]} {
    %c0_i32 = arith.constant 0 : i32
    %0 = arith.cmpi eq, %arg2, %c0_i32 : i32
    %1 = arith.extui %0 : i1 to i32
    %c0_i32_0 = arith.constant 0 : i32
    %2 = arith.cmpi ne, %1, %c0_i32_0 : i32
    scf.if %2 {
      %cst_26 = arith.constant 0xFF800000 : f32
      %41 = vector.broadcast %cst_26 : f32 to vector<256x1xf32>
      %c0_27 = arith.constant 0 : index
      %c0_28 = arith.constant 0 : index
      %42 = vector.load %arg7[%c0_27, %c0_28] : memref<256x1xf32, #tpu.memory_space<vmem>>, vector<256x1xf32>
      tpu.vector_store %arg7[%c0_27, %c0_28], %41 {strides = array<i32>} : memref<256x1xf32, #tpu.memory_space<vmem>>, vector<256x1xf32>,
      %cst_29 = arith.constant 0.000000e+00 : f32
      %43 = vector.broadcast %cst_29 : f32 to vector<256x1xf32>
      %c0_30 = arith.constant 0 : index
      %c0_31 = arith.constant 0 : index
      %44 = vector.load %arg8[%c0_30, %c0_31] : memref<256x1xf32, #tpu.memory_space<vmem>>, vector<256x1xf32>
      tpu.vector_store %arg8[%c0_30, %c0_31], %43 {strides = array<i32>} : memref<256x1xf32, #tpu.memory_space<vmem>>, vector<256x1xf32>,
      %cst_32 = arith.constant 0.000000e+00 : f32
      %45 = vector.broadcast %cst_32 : f32 to vector<256x256xf32>
      %c0_33 = arith.constant 0 : index
      %c0_34 = arith.constant 0 : index
      %46 = vector.load %arg9[%c0_33, %c0_34] : memref<256x256xf32, #tpu.memory_space<vmem>>, vector<256x256xf32>
      tpu.vector_store %arg9[%c0_33, %c0_34], %45 {strides = array<i32>} : memref<256x256xf32, #tpu.memory_space<vmem>>, vector<256x256xf32>,
    } else {
    }
    %c0 = arith.constant 0 : index
    %c0_1 = arith.constant 0 : index
    %c0_2 = arith.constant 0 : index
    %3 = vector.load %arg3[%c0, %c0_1, %c0_2] : memref<1x256x128xf32, #tpu.memory_space<vmem>>, vector<1x256x128xf32>
    %4 = vector.shape_cast %3 : vector<1x256x128xf32> to vector<256x128xf32>
    %cst = arith.constant 0.0883883461 : f32
    %5 = vector.broadcast %cst : f32 to vector<256x128xf32>
    %6 = arith.mulf %4, %5 : vector<256x128xf32>
    %7 = arith.truncf %6 : vector<256x128xf32> to vector<256x128xbf16>
    %c0_3 = arith.constant 0 : index
    %c0_4 = arith.constant 0 : index
    %c0_5 = arith.constant 0 : index
    %8 = vector.load %arg4[%c0_3, %c0_4, %c0_5] : memref<1x256x128xf32, #tpu.memory_space<vmem>>, vector<1x256x128xf32>
    %9 = vector.shape_cast %8 : vector<1x256x128xf32> to vector<256x128xf32>
    %10 = arith.truncf %9 : vector<256x128xf32> to vector<256x128xbf16>
    %cst_6 = arith.constant dense<0.000000e+00> : vector<256x256xf32>
    %11 = tpu.matmul %7, %10, %cst_6 {dimension_numbers = #tpu.dot_dimension_numbers<[1], [1], [0], [0], [0, 0, 1, 0], [], []>} : vector<256x128xbf16>, vector<256x128xbf16>, vector<256x256xf32> -> vector<256x256xf32>
    %c0_7 = arith.constant 0 : index
    %c0_8 = arith.constant 0 : index
    %12 = vector.load %arg7[%c0_7, %c0_8] : memref<256x1xf32, #tpu.memory_space<vmem>>, vector<256x1xf32>
    %cst_9 = arith.constant dense<0xFF800000> : vector<256xf32>
    %13 = vector.multi_reduction <maximumf>, %11, %cst_9 [1] : vector<256x256xf32> to vector<256xf32>
    %14 = vector.shape_cast %13 : vector<256xf32> to vector<256x1xf32>
    %15 = arith.maximumf %12, %14 : vector<256x1xf32>
    %16 = arith.subf %12, %15 : vector<256x1xf32>
    %17 = math.exp %16 : vector<256x1xf32>
    %18 = vector.broadcast %15 : vector<256x1xf32> to vector<256x256xf32>
    %19 = arith.subf %11, %18 : vector<256x256xf32>
    %20 = math.exp %19 : vector<256x256xf32>
    %c0_10 = arith.constant 0 : index
    %c0_11 = arith.constant 0 : index
    %21 = vector.load %arg8[%c0_10, %c0_11] : memref<256x1xf32, #tpu.memory_space<vmem>>, vector<256x1xf32>
    %22 = arith.mulf %17, %21 : vector<256x1xf32>
    %cst_12 = arith.constant dense<0.000000e+00> : vector<256xf32>
    %23 = vector.multi_reduction <add>, %20, %cst_12 [1] : vector<256x256xf32> to vector<256xf32>
    %24 = vector.shape_cast %23 : vector<256xf32> to vector<256x1xf32>
    %25 = arith.addf %22, %24 : vector<256x1xf32>
    %c0_13 = arith.constant 0 : index
    %c0_14 = arith.constant 0 : index
    %26 = vector.load %arg8[%c0_13, %c0_14] : memref<256x1xf32, #tpu.memory_space<vmem>>, vector<256x1xf32>
    tpu.vector_store %arg8[%c0_13, %c0_14], %25 {strides = array<i32>} : memref<256x1xf32, #tpu.memory_space<vmem>>, vector<256x1xf32>,
    %c0_15 = arith.constant 0 : index
    %c0_16 = arith.constant 0 : index
    %27 = vector.load %arg9[%c0_15, %c0_16] : memref<256x256xf32, #tpu.memory_space<vmem>>, vector<256x256xf32>
    %28 = vector.broadcast %17 : vector<256x1xf32> to vector<256x256xf32>
    %29 = arith.mulf %28, %27 : vector<256x256xf32>
    %30 = arith.truncf %20 : vector<256x256xf32> to vector<256x256xbf16>
    %c0_17 = arith.constant 0 : index
    %c0_18 = arith.constant 0 : index
    %c0_19 = arith.constant 0 : index
    %31 = vector.load %arg5[%c0_17, %c0_18, %c0_19] : memref<1x256x256xf32, #tpu.memory_space<vmem>>, vector<1x256x256xf32>
    %32 = vector.shape_cast %31 : vector<1x256x256xf32> to vector<256x256xf32>
    %33 = arith.truncf %32 : vector<256x256xf32> to vector<256x256xbf16>
    %cst_20 = arith.constant dense<0.000000e+00> : vector<256x256xf32>
    %34 = tpu.matmul %30, %33, %cst_20 {dimension_numbers = #tpu.dot_dimension_numbers<[1], [0], [0], [1], [0, 0, 1, 1], [], []>} : vector<256x256xbf16>, vector<256x256xbf16>, vector<256x256xf32> -> vector<256x256xf32>
    %35 = arith.addf %29, %34 : vector<256x256xf32>
    %c0_21 = arith.constant 0 : index
    %c0_22 = arith.constant 0 : index
    %36 = vector.load %arg9[%c0_21, %c0_22] : memref<256x256xf32, #tpu.memory_space<vmem>>, vector<256x256xf32>
    tpu.vector_store %arg9[%c0_21, %c0_22], %35 {strides = array<i32>} : memref<256x256xf32, #tpu.memory_space<vmem>>, vector<256x256xf32>,
    %c0_23 = arith.constant 0 : index
    %c0_24 = arith.constant 0 : index
    %37 = vector.load %arg7[%c0_23, %c0_24] : memref<256x1xf32, #tpu.memory_space<vmem>>, vector<256x1xf32>
    tpu.vector_store %arg7[%c0_23, %c0_24], %15 {strides = array<i32>} : memref<256x1xf32, #tpu.memory_space<vmem>>, vector<256x1xf32>,
    %c1_i32 = arith.constant 1 : i32
    %38 = arith.cmpi eq, %arg2, %c1_i32 : i32
    %39 = arith.extui %38 : i1 to i32
    %c0_i32_25 = arith.constant 0 : i32
    %40 = arith.cmpi ne, %39, %c0_i32_25 : i32
    scf.if %40 {
      %c0_26 = arith.constant 0 : index
      %c0_27 = arith.constant 0 : index
      %41 = vector.load %arg8[%c0_26, %c0_27] : memref<256x1xf32, #tpu.memory_space<vmem>>, vector<256x1xf32>
      %42 = tpu.reciprocal %41 {approx = true} : vector<256x1xf32> -> vector<256x1xf32>
      %c0_28 = arith.constant 0 : index
      %c0_29 = arith.constant 0 : index
      %43 = vector.load %arg9[%c0_28, %c0_29] : memref<256x256xf32, #tpu.memory_space<vmem>>, vector<256x256xf32>
      %44 = vector.broadcast %42 : vector<256x1xf32> to vector<256x256xf32>
      %45 = arith.mulf %43, %44 : vector<256x256xf32>
      %c0_30 = arith.constant 0 : index
      %c0_31 = arith.constant 0 : index
      %c0_32 = arith.constant 0 : index
      %46 = vector.load %arg6[%c0_30, %c0_31, %c0_32] : memref<1x256x256xf32, #tpu.memory_space<vmem>>, vector<1x256x256xf32>
      %47 = vector.shape_cast %46 : vector<1x256x256xf32> to vector<256x256xf32>
      %48 = vector.shape_cast %45 : vector<256x256xf32> to vector<1x256x256xf32>
      tpu.vector_store %arg6[%c0_30, %c0_31, %c0_32], %48 {strides = array<i32>} : memref<1x256x256xf32, #tpu.memory_space<vmem>>, vector<1x256x256xf32>,
    } else {
    }
    return
  }
  func.func @transform_0(%arg0: i32, %arg1: i32, %arg2: i32) -> (i32, i32, i32) {
    %c0_i32 = arith.constant 0 : i32
    %c0_i32_0 = arith.constant 0 : i32
    return %arg0, %arg1, %c0_i32 : i32, i32, i32
  }
  func.func @transform_1(%arg0: i32, %arg1: i32, %arg2: i32) -> (i32, i32, i32) {
    %c0_i32 = arith.constant 0 : i32
    %c0_i32_0 = arith.constant 0 : i32
    return %arg0, %arg2, %c0_i32 : i32, i32, i32
  }
  func.func @transform_2(%arg0: i32, %arg1: i32, %arg2: i32) -> (i32, i32, i32) {
    %c0_i32 = arith.constant 0 : i32
    %c0_i32_0 = arith.constant 0 : i32
    return %arg0, %arg2, %c0_i32 : i32, i32, i32
  }
  func.func @transform_3(%arg0: i32, %arg1: i32, %arg2: i32) -> (i32, i32, i32) {
    %c0_i32 = arith.constant 0 : i32
    %c0_i32_0 = arith.constant 0 : i32
    return %arg0, %arg1, %c0_i32 : i32, i32, i32
  }
}

</mosaic_0001>

<llo_original>
// kernel: tpu_custom_call.1
$region0: #{tpu_custom_call.1}
  #allocation0 [shape = 'u32[]', space=smem, size = 0x4, offset = 0x4, fixed_abs, tag = 'smem constant byte address 0x4 - core index']
  #allocation1 [shape = 'u32[144,128]{1,0:T(1,128)}', space=vmem, size = 0x12000, scoped, tag = 'internal scratch']
  #allocation2 [shape = 'f32[256,1]{1,0:T(8,128)}', space=vmem, size = 0x20000, scoped, tag = 'scratch operand']
  #allocation3 [shape = 'f32[256,1]{1,0:T(8,128)}', space=vmem, size = 0x20000, scoped, tag = 'scratch operand']
  #allocation4 [shape = 'f32[256,256]{1,0:T(8,128)}', space=vmem, size = 0x40000, scoped, tag = 'scratch operand']
  %s0 = inlined_call_operand.hbm [shape: f32[2,512,128], index: 0, kind: input, shape index: {}]
  %s1 = inlined_call_operand.hbm [shape: f32[2,512,128], index: 1, kind: input, shape index: {}]
  %s2 = inlined_call_operand.hbm [shape: f32[2,512,256], index: 2, kind: input, shape index: {}]
  %s3 = inlined_call_operand.hbm [shape: f32[2,512,256], index: 3, kind: output, shape index: {}]
  %s4 = sld [smem:[#allocation0]]
  $region65: #{tpu_custom_call.1} parent=0
    _
  %s6 = ssub.s32 1, %s4
  %s7 = scalar_select 0, %s6, %s4
  $region1: #{tpu_custom_call.1} parent=0
    #allocation5 [shape = 'u8[262144]{0}', space=vmem, size = 0x40000, scoped, tag = 'input window, operand 0']
    #allocation6 [shape = 's32[2]{0}', space=sflag, size = 0x8, scoped, tag = 'scoped memory for tpu_custom_call.1']
    #allocation7 [shape = 's32[2]{0}', space=sflag, size = 0x8, scoped, tag = 'scoped memory for tpu_custom_call.1']
    #allocation8 [shape = 'u8[262144]{0}', space=vmem, size = 0x40000, scoped, tag = 'input window, operand 1']
    #allocation9 [shape = 's32[2]{0}', space=sflag, size = 0x8, scoped, tag = 'scoped memory for tpu_custom_call.1']
    #allocation10 [shape = 'u8[524288]{0}', space=vmem, size = 0x80000, scoped, tag = 'input window, operand 2']
    #allocation11 [shape = 'u8[524288]{0}', space=vmem, size = 0x80000, scoped, tag = 'output window, operand 0']
    %8 = vsyncpa [#allocation6], 0
    %s9 = scalar_lea.sflag [#allocation6], 1
    %10 = vsyncpa %s9, 0
    %11 = vsyncpa [#allocation9], 0
    %s12 = scalar_lea.sflag [#allocation9], 1
    %13 = vsyncpa %s12, 0
    %14 = vsyncpa [#allocation7], 0
    %s15 = scalar_lea.sflag [#allocation7], 1
    %16 = vsyncpa %s15, 0
    loop: start=0, step=1, limit=10
    $region2: #{tpu_custom_call.1} parent=1 // loop_pre_header
      _
    $region3: #{tpu_custom_call.1} parent=1 // loop_header
      %s18 = sphi 0, %s22
      %p19 = scmp.ge.s32.totalorder %s18, 10
      %s25 = sphi 0, %s44
      %s26 = sphi 0, %s40
      %s27 = sphi 0, %s36
      %s28 = sphi 0, %s25
      %s29 = sphi 0, %s26
      %s30 = sphi 0, %s27
      %s31 = sphi 0, %s28
      %s32 = sphi 0, %s29
      %s33 = sphi 0, %s30
      %s49 = sphi 0, %s51
      %s52 = sphi 0, %s49
      %s53 = sphi 0, %s52
      %s69 = sphi 0, %s53
      %s77 = sphi 0, %s79
      %s80 = sphi 0, %s77
      %s81 = sphi 0, %s80
      %s97 = sphi 0, %s81
      %s105 = sphi 0, %s107
      %s108 = sphi 0, %s105
      %s109 = sphi 0, %s108
      %s125 = sphi 0, %s109
      %s133 = sphi 0, %s135
      %s136 = sphi 0, %s133
      %s137 = sphi 0, %s136
      %s153 = sphi 0, %s137
    $region4: #{tpu_custom_call.1} parent=1 // loop_header_branch
      %21 = sbr.rel (%p19) target = $region8
    $region5: #{tpu_custom_call.1} parent=1 // loop_body
      %s23 = ssub.s32 %s18, 1
      %s24 = ssub.s32 %s18, 2
      %s34 = sadd.s32 1, %s27
      %p35 = scmp.ge.s32.totalorder %s34, 2
      %s36 = scalar_select %p35, 0, %s34
      %s37 = sadd.s32 1, %s26
      %s38 = scalar_select %p35, %s37, %s26
      %p39 = scmp.ge.s32.totalorder %s38, 2
      %s40 = scalar_select %p39, 0, %s38
      %s41 = sadd.s32 1, %s25
      %s42 = scalar_select %p39, %s41, %s25
      %p43 = scmp.ge.s32.totalorder %s42, 2
      %s44 = scalar_select %p43, 0, %s42
      %s45 = ssub.s32 %s25, %s44
      %s46 = ssub.s32 %s26, %s40
      %s47 = sor.u32 %s45, %s46
      %p48 = scmp.eq.s32.totalorder %s47, 0
      %s50 = sadd.s32 %s49, 1
      %s51 = scalar_select %p48, %s49, %s50
      %p54 = pneg %p48
      %p55 = scmp.eq.s32.totalorder %s18, 7
      %p56 = por %p54, %p55
      %p57 = scmp.ne.s32.totalorder %s49, %s52
      %p58 = scmp.eq.s32.totalorder %s18, 0
      %p59 = por %p57, %p58
      %p60 = scmp.ne.s32.totalorder %s49, %s52
      %p61 = scmp.eq.s32.totalorder %s23, 7
      %p62 = por %p60, %p61
      %p63 = scmp.ne.s32.totalorder %s52, %s53
      %p64 = scmp.eq.s32.totalorder %s23, 0
      %p65 = por %p63, %p64
      %p66 = scmp.ne.s32.totalorder %s52, %s53
      %p67 = scmp.eq.s32.totalorder %s24, 7
      %p68 = por %p66, %p67
      %p70 = scmp.ne.s32.totalorder %s53, %s69
      %p71 = scmp.eq.s32.totalorder %s24, 0
      %p72 = por %p70, %p71
      %s73 = ssub.s32 %s25, %s44
      %s74 = ssub.s32 %s27, %s36
      %s75 = sor.u32 %s73, %s74
      %p76 = scmp.eq.s32.totalorder %s75, 0
      %s78 = sadd.s32 %s77, 1
      %s79 = scalar_select %p76, %s77, %s78
      %p82 = pneg %p76
      %p83 = scmp.eq.s32.totalorder %s18, 7
      %p84 = por %p82, %p83
      %p85 = scmp.ne.s32.totalorder %s77, %s80
      %p86 = scmp.eq.s32.totalorder %s18, 0
      %p87 = por %p85, %p86
      %p88 = scmp.ne.s32.totalorder %s77, %s80
      %p89 = scmp.eq.s32.totalorder %s23, 7
      %p90 = por %p88, %p89
      %p91 = scmp.ne.s32.totalorder %s80, %s81
      %p92 = scmp.eq.s32.totalorder %s23, 0
      %p93 = por %p91, %p92
      %p94 = scmp.ne.s32.totalorder %s80, %s81
      %p95 = scmp.eq.s32.totalorder %s24, 7
      %p96 = por %p94, %p95
      %p98 = scmp.ne.s32.totalorder %s81, %s97
      %p99 = scmp.eq.s32.totalorder %s24, 0
      %p100 = por %p98, %p99
      %s101 = ssub.s32 %s25, %s44
      %s102 = ssub.s32 %s27, %s36
      %s103 = sor.u32 %s101, %s102
      %p104 = scmp.eq.s32.totalorder %s103, 0
      %s106 = sadd.s32 %s105, 1
      %s107 = scalar_select %p104, %s105, %s106
      %p110 = pneg %p104
      %p111 = scmp.eq.s32.totalorder %s18, 7
      %p112 = por %p110, %p111
      %p113 = scmp.ne.s32.totalorder %s105, %s108
      %p114 = scmp.eq.s32.totalorder %s18, 0
      %p115 = por %p113, %p114
      %p116 = scmp.ne.s32.totalorder %s105, %s108
      %p117 = scmp.eq.s32.totalorder %s23, 7
      %p118 = por %p116, %p117
      %p119 = scmp.ne.s32.totalorder %s108, %s109
      %p120 = scmp.eq.s32.totalorder %s23, 0
      %p121 = por %p119, %p120
      %p122 = scmp.ne.s32.totalorder %s108, %s109
      %p123 = scmp.eq.s32.totalorder %s24, 7
      %p124 = por %p122, %p123
      %p126 = scmp.ne.s32.totalorder %s109, %s125
      %p127 = scmp.eq.s32.totalorder %s24, 0
      %p128 = por %p126, %p127
      %s129 = ssub.s32 %s25, %s44
      %s130 = ssub.s32 %s26, %s40
      %s131 = sor.u32 %s129, %s130
      %p132 = scmp.eq.s32.totalorder %s131, 0
      %s134 = sadd.s32 %s133, 1
      %s135 = scalar_select %p132, %s133, %s134
      %p138 = pneg %p132
      %p139 = scmp.eq.s32.totalorder %s18, 7
      %p140 = por %p138, %p139
      %p141 = scmp.ne.s32.totalorder %s133, %s136
      %p142 = scmp.eq.s32.totalorder %s18, 0
      %p143 = por %p141, %p142
      %p144 = scmp.ne.s32.totalorder %s133, %s136
      %p145 = scmp.eq.s32.totalorder %s23, 7
      %p146 = por %p144, %p145
      %p147 = scmp.ne.s32.totalorder %s136, %s137
      %p148 = scmp.eq.s32.totalorder %s23, 0
      %p149 = por %p147, %p148
      %p150 = scmp.ne.s32.totalorder %s136, %s137
      %p151 = scmp.eq.s32.totalorder %s24, 7
      %p152 = por %p150, %p151
      %p154 = scmp.ne.s32.totalorder %s137, %s153
      %p155 = scmp.eq.s32.totalorder %s24, 0
      %p156 = por %p154, %p155
      %p157 = scmp.le.s32.totalorder 1, %s18
      %p158 = scmp.lt.s32.totalorder %s18, 9
      %p159 = pnand %p157, %p158
      %p160 = pneg %p159
      // Predicated region
      $region9: #{tpu_custom_call.1} parent=5 // pred_check
        _
      $region10: #{tpu_custom_call.1} parent=5 // pred_check_branch
        %162 = sbr.rel (%p159) target = $region12
      $region11: #{tpu_custom_call.1} parent=5 // pred_region
        %s163 = ssub.s32 %s18, 1
      $region12: #{tpu_custom_call.1} parent=5 // pred_fallthru
        _
      %p164 = scmp.lt.s32.totalorder %s18, 8
      // Predicated region
      $region13: #{tpu_custom_call.1} parent=5 // pred_check
        %p165 = pneg %p164
      $region14: #{tpu_custom_call.1} parent=5 // pred_check_branch
        %167 = sbr.rel (%p165) target = $region16
      $region15: #{tpu_custom_call.1} parent=5 // pred_region
        // Predicated region
        $region17: #{tpu_custom_call.1} parent=15 // pred_check
          %p168 = pneg %p59
        $region18: #{tpu_custom_call.1} parent=15 // pred_check_branch
          %170 = sbr.rel (%p168) target = $region20
        $region19: #{tpu_custom_call.1} parent=15 // pred_region
          %s171 = sand.u32 %s49, 1
          %s172 = scalar_lea.sflag [#allocation6], %s171
          %s173 = sand.u32 %s49, 1
          %s174 = smul.addr %s173, 256
          %s175 = scalar_lea.vmem [#allocation5], %s174
          %s176 = smul.u32 32, %s26
          %s178 = ssub.s32 4096, 4096
          %179 = vsyncadd %s172, %s178
          %s180 = smul.addr %s25, 64
          %s181 = sadd.s32 %s176, %s180
          %s182 = smul.addr %s181, 128
          %s183 = scalar_lea.hbm %s0, %s182
          %s184 = sshll.u32 %s175, 4
          %s185 = int_to_ptr.vmem [resolvable:$true] %s184
          %190 = dma.hbm_to_vmem [thread:$0]  %s183, 4096, %s185, %s172, 128, 128, 8
        $region20: #{tpu_custom_call.1} parent=15 // pred_fallthru
          _
        // Predicated region
        $region21: #{tpu_custom_call.1} parent=15 // pred_check
          %p191 = pneg %p87
        $region22: #{tpu_custom_call.1} parent=15 // pred_check_branch
          %193 = sbr.rel (%p191) target = $region24
        $region23: #{tpu_custom_call.1} parent=15 // pred_region
          %s194 = sand.u32 %s18, 1
          %s195 = scalar_lea.sflag [#allocation9], %s194
          %s196 = sand.u32 %s77, 1
          %s197 = smul.addr %s196, 256
          %s198 = scalar_lea.vmem [#allocation8], %s197
          %s199 = smul.u32 32, %s27
          %s201 = ssub.s32 4096, 4096
          %202 = vsyncadd %s195, %s201
          %s203 = smul.addr %s25, 64
          %s204 = sadd.s32 %s199, %s203
          %s205 = smul.addr %s204, 128
          %s206 = scalar_lea.hbm %s1, %s205
          %s207 = sshll.u32 %s198, 4
          %s208 = int_to_ptr.vmem [resolvable:$true] %s207
          %213 = dma.hbm_to_vmem [thread:$0]  %s206, 4096, %s208, %s195, 128, 128, 8
        $region24: #{tpu_custom_call.1} parent=15 // pred_fallthru
          _
        // Predicated region
        $region25: #{tpu_custom_call.1} parent=15 // pred_check
          %p214 = pneg %p115
        $region26: #{tpu_custom_call.1} parent=15 // pred_check_branch
          %216 = sbr.rel (%p214) target = $region28
        $region27: #{tpu_custom_call.1} parent=15 // pred_region
          %s217 = sand.u32 %s18, 1
          %s218 = scalar_lea.sflag [#allocation9], %s217
          %s219 = sand.u32 %s105, 1
          %s220 = smul.addr %s219, 512
          %s221 = scalar_lea.vmem [#allocation10], %s220
          %s222 = smul.u32 32, %s27
          %s224 = ssub.s32 8192, 8192
          %225 = vsyncadd %s218, %s224
          %s226 = smul.addr %s222, 2
          %s227 = smul.addr %s25, 128
          %s228 = sadd.s32 %s226, %s227
          %s229 = smul.addr %s228, 128
          %s230 = scalar_lea.hbm %s2, %s229
          %s231 = sshll.u32 %s221, 4
          %s232 = int_to_ptr.vmem [resolvable:$true] %s231
          %237 = dma.hbm_to_vmem [thread:$0]  %s230, 8192, %s232, %s218, 256, 256, 16
        $region28: #{tpu_custom_call.1} parent=15 // pred_fallthru
          _
      $region16: #{tpu_custom_call.1} parent=5 // pred_fallthru
        _
      %p238 = scmp.le.s32.totalorder 1, %s18
      %p239 = scmp.lt.s32.totalorder %s18, 9
      %p240 = pnand %p238, %p239
      %p241 = pneg %p240
      // Predicated region
      $region29: #{tpu_custom_call.1} parent=5 // pred_check
        _
      $region30: #{tpu_custom_call.1} parent=5 // pred_check_branch
        %243 = sbr.rel (%p240) target = $region32
      $region31: #{tpu_custom_call.1} parent=5 // pred_region
        %s244 = ssub.s32 %s18, 1
        %s245 = sand.u32 %s52, 1
        %s246 = scalar_lea.sflag [#allocation6], %s245
        %s247 = sand.u32 %s52, 1
        %s248 = smul.addr %s247, 256
        %s249 = scalar_lea.vmem [#allocation5], %s248
        // Predicated region
        $region33: #{tpu_custom_call.1} parent=31 // pred_check
          %p250 = pneg %p65
        $region34: #{tpu_custom_call.1} parent=31 // pred_check_branch
          %252 = sbr.rel (%p250) target = $region36
        $region35: #{tpu_custom_call.1} parent=31 // pred_region
          %253 = dma.done %s246, 4096
        $region36: #{tpu_custom_call.1} parent=31 // pred_fallthru
          _
        %s254 = sand.u32 %s23, 1
        %s255 = scalar_lea.sflag [#allocation9], %s254
        %s256 = sand.u32 %s80, 1
        %s257 = smul.addr %s256, 256
        %s258 = scalar_lea.vmem [#allocation8], %s257
        // Predicated region
        $region37: #{tpu_custom_call.1} parent=31 // pred_check
          %p259 = pneg %p93
        $region38: #{tpu_custom_call.1} parent=31 // pred_check_branch
          %261 = sbr.rel (%p259) target = $region40
        $region39: #{tpu_custom_call.1} parent=31 // pred_region
          %262 = dma.done %s255, 4096
        $region40: #{tpu_custom_call.1} parent=31 // pred_fallthru
          _
        %s263 = sand.u32 %s23, 1
        %s264 = scalar_lea.sflag [#allocation9], %s263
        %s265 = sand.u32 %s108, 1
        %s266 = smul.addr %s265, 512
        %s267 = scalar_lea.vmem [#allocation10], %s266
        // Predicated region
        $region41: #{tpu_custom_call.1} parent=31 // pred_check
          %p268 = pneg %p121
        $region42: #{tpu_custom_call.1} parent=31 // pred_check_branch
          %270 = sbr.rel (%p268) target = $region44
        $region43: #{tpu_custom_call.1} parent=31 // pred_region
          %271 = dma.done %s264, 8192
        $region44: #{tpu_custom_call.1} parent=31 // pred_fallthru
          _
        %s272 = sand.u32 %s52, 1
        %s273 = scalar_lea.sflag [#allocation6], %s272
        %s274 = sand.u32 %s52, 1
        %s275 = smul.addr %s274, 256
        %s276 = scalar_lea.vmem [#allocation5], %s275
        %p277 = pneg %p65
        %p278 = pneg %p62
        %s279 = sand.u32 %s23, 1
        %s280 = scalar_lea.sflag [#allocation9], %s279
        %s281 = sand.u32 %s80, 1
        %s282 = smul.addr %s281, 256
        %s283 = scalar_lea.vmem [#allocation8], %s282
        %p284 = pneg %p93
        %p285 = pneg %p90
        %s286 = sand.u32 %s23, 1
        %s287 = scalar_lea.sflag [#allocation9], %s286
        %s288 = sand.u32 %s108, 1
        %s289 = smul.addr %s288, 512
        %s290 = scalar_lea.vmem [#allocation10], %s289
        %p291 = pneg %p121
        %p292 = pneg %p118
        %p293 = pneg %p149
        %p294 = pneg %p146
        %s295 = sand.u32 %s136, 1
        %s296 = scalar_lea.sflag [#allocation7], %s295
        %s297 = sand.u32 %s136, 1
        %s298 = smul.addr %s297, 512
        %s299 = scalar_lea.vmem [#allocation11], %s298
        %s300 = smul.u32 32, %s29
        %s301 = smul.u32 32, %s30
        %s302 = smul.u32 32, %s30
        %s303 = smul.u32 32, %s29
        %p305 = scmp.eq.s32.totalorder %s30, 0
        // Predicated region
        $region45: #{tpu_custom_call.1} parent=31 // pred_check
          %p306 = pneg %p305
        $region46: #{tpu_custom_call.1} parent=31 // pred_check_branch
          %308 = sbr.rel (%p306) target = $region48
        $region47: #{tpu_custom_call.1} parent=31 // pred_region
          %vm309 = vcmask 7168
          %310 = vst.msk [vmem:[#allocation2] sm:$0xff] %vm309, -inf
          %311 = vst.msk [vmem:[#allocation2 + $0x8] sm:$0xff] %vm309, -inf
          %312 = vst.msk [vmem:[#allocation2 + $0x10] sm:$0xff] %vm309, -inf
          %313 = vst.msk [vmem:[#allocation2 + $0x18] sm:$0xff] %vm309, -inf
          %314 = vst.msk [vmem:[#allocation2 + $0x20] sm:$0xff] %vm309, -inf
          %315 = vst.msk [vmem:[#allocation2 + $0x28] sm:$0xff] %vm309, -inf
          %316 = vst.msk [vmem:[#allocation2 + $0x30] sm:$0xff] %vm309, -inf
          %317 = vst.msk [vmem:[#allocation2 + $0x38] sm:$0xff] %vm309, -inf
          %318 = vst.msk [vmem:[#allocation2 + $0x40] sm:$0xff] %vm309, -inf
          %319 = vst.msk [vmem:[#allocation2 + $0x48] sm:$0xff] %vm309, -inf
          %320 = vst.msk [vmem:[#allocation2 + $0x50] sm:$0xff] %vm309, -inf
          %321 = vst.msk [vmem:[#allocation2 + $0x58] sm:$0xff] %vm309, -inf
          %322 = vst.msk [vmem:[#allocation2 + $0x60] sm:$0xff] %vm309, -inf
          %323 = vst.msk [vmem:[#allocation2 + $0x68] sm:$0xff] %vm309, -inf
          %324 = vst.msk [vmem:[#allocation2 + $0x70] sm:$0xff] %vm309, -inf
          %325 = vst.msk [vmem:[#allocation2 + $0x78] sm:$0xff] %vm309, -inf
          %326 = vst.msk [vmem:[#allocation2 + $0x80] sm:$0xff] %vm309, -inf
          %327 = vst.msk [vmem:[#allocation2 + $0x88] sm:$0xff] %vm309, -inf
          %328 = vst.msk [vmem:[#allocation2 + $0x90] sm:$0xff] %vm309, -inf
          %329 = vst.msk [vmem:[#allocation2 + $0x98] sm:$0xff] %vm309, -inf
          %330 = vst.msk [vmem:[#allocation2 + $0xa0] sm:$0xff] %vm309, -inf
          %331 = vst.msk [vmem:[#allocation2 + $0xa8] sm:$0xff] %vm309, -inf
          %332 = vst.msk [vmem:[#allocation2 + $0xb0] sm:$0xff] %vm309, -inf
          %333 = vst.msk [vmem:[#allocation2 + $0xb8] sm:$0xff] %vm309, -inf
          %334 = vst.msk [vmem:[#allocation2 + $0xc0] sm:$0xff] %vm309, -inf
          %335 = vst.msk [vmem:[#allocation2 + $0xc8] sm:$0xff] %vm309, -inf
          %336 = vst.msk [vmem:[#allocation2 + $0xd0] sm:$0xff] %vm309, -inf
          %337 = vst.msk [vmem:[#allocation2 + $0xd8] sm:$0xff] %vm309, -inf
          %338 = vst.msk [vmem:[#allocation2 + $0xe0] sm:$0xff] %vm309, -inf
          %339 = vst.msk [vmem:[#allocation2 + $0xe8] sm:$0xff] %vm309, -inf
          %340 = vst.msk [vmem:[#allocation2 + $0xf0] sm:$0xff] %vm309, -inf
          %341 = vst.msk [vmem:[#allocation2 + $0xf8] sm:$0xff] %vm309, -inf
          %342 = vst.msk [vmem:[#allocation3] sm:$0xff] %vm309, 0.0
          %343 = vst.msk [vmem:[#allocation3 + $0x8] sm:$0xff] %vm309, 0.0
          %344 = vst.msk [vmem:[#allocation3 + $0x10] sm:$0xff] %vm309, 0.0
          %345 = vst.msk [vmem:[#allocation3 + $0x18] sm:$0xff] %vm309, 0.0
          %346 = vst.msk [vmem:[#allocation3 + $0x20] sm:$0xff] %vm309, 0.0
          %347 = vst.msk [vmem:[#allocation3 + $0x28] sm:$0xff] %vm309, 0.0
          %348 = vst.msk [vmem:[#allocation3 + $0x30] sm:$0xff] %vm309, 0.0
          %349 = vst.msk [vmem:[#allocation3 + $0x38] sm:$0xff] %vm309, 0.0
          %350 = vst.msk [vmem:[#allocation3 + $0x40] sm:$0xff] %vm309, 0.0
          %351 = vst.msk [vmem:[#allocation3 + $0x48] sm:$0xff] %vm309, 0.0
          %352 = vst.msk [vmem:[#allocation3 + $0x50] sm:$0xff] %vm309, 0.0
          %353 = vst.msk [vmem:[#allocation3 + $0x58] sm:$0xff] %vm309, 0.0
          %354 = vst.msk [vmem:[#allocation3 + $0x60] sm:$0xff] %vm309, 0.0
          %355 = vst.msk [vmem:[#allocation3 + $0x68] sm:$0xff] %vm309, 0.0
          %356 = vst.msk [vmem:[#allocation3 + $0x70] sm:$0xff] %vm309, 0.0
          %357 = vst.msk [vmem:[#allocation3 + $0x78] sm:$0xff] %vm309, 0.0
          %358 = vst.msk [vmem:[#allocation3 + $0x80] sm:$0xff] %vm309, 0.0
          %359 = vst.msk [vmem:[#allocation3 + $0x88] sm:$0xff] %vm309, 0.0
          %360 = vst.msk [vmem:[#allocation3 + $0x90] sm:$0xff] %vm309, 0.0
          %361 = vst.msk [vmem:[#allocation3 + $0x98] sm:$0xff] %vm309, 0.0
          %362 = vst.msk [vmem:[#allocation3 + $0xa0] sm:$0xff] %vm309, 0.0
          %363 = vst.msk [vmem:[#allocation3 + $0xa8] sm:$0xff] %vm309, 0.0
          %364 = vst.msk [vmem:[#allocation3 + $0xb0] sm:$0xff] %vm309, 0.0
          %365 = vst.msk [vmem:[#allocation3 + $0xb8] sm:$0xff] %vm309, 0.0
          %366 = vst.msk [vmem:[#allocation3 + $0xc0] sm:$0xff] %vm309, 0.0
          %367 = vst.msk [vmem:[#allocation3 + $0xc8] sm:$0xff] %vm309, 0.0
          %368 = vst.msk [vmem:[#allocation3 + $0xd0] sm:$0xff] %vm309, 0.0
          %369 = vst.msk [vmem:[#allocation3 + $0xd8] sm:$0xff] %vm309, 0.0
          %370 = vst.msk [vmem:[#allocation3 + $0xe0] sm:$0xff] %vm309, 0.0
          %371 = vst.msk [vmem:[#allocation3 + $0xe8] sm:$0xff] %vm309, 0.0
          %372 = vst.msk [vmem:[#allocation3 + $0xf0] sm:$0xff] %vm309, 0.0
          %373 = vst.msk [vmem:[#allocation3 + $0xf8] sm:$0xff] %vm309, 0.0
          %374 = vst [vmem:[#allocation4] sm:$0xff] 0.0
          %375 = vst [vmem:[#allocation4 + $0x8] sm:$0xff] 0.0
          %376 = vst [vmem:[#allocation4 + $0x10] sm:$0xff] 0.0
          %377 = vst [vmem:[#allocation4 + $0x18] sm:$0xff] 0.0
          %378 = vst [vmem:[#allocation4 + $0x20] sm:$0xff] 0.0
          %379 = vst [vmem:[#allocation4 + $0x28] sm:$0xff] 0.0
          %380 = vst [vmem:[#allocation4 + $0x30] sm:$0xff] 0.0
          %381 = vst [vmem:[#allocation4 + $0x38] sm:$0xff] 0.0
          %382 = vst [vmem:[#allocation4 + $0x40] sm:$0xff] 0.0
          %383 = vst [vmem:[#allocation4 + $0x48] sm:$0xff] 0.0
          %384 = vst [vmem:[#allocation4 + $0x50] sm:$0xff] 0.0
          %385 = vst [vmem:[#allocation4 + $0x58] sm:$0xff] 0.0
          %386 = vst [vmem:[#allocation4 + $0x60] sm:$0xff] 0.0
          %387 = vst [vmem:[#allocation4 + $0x68] sm:$0xff] 0.0
          %388 = vst [vmem:[#allocation4 + $0x70] sm:$0xff] 0.0
          %389 = vst [vmem:[#allocation4 + $0x78] sm:$0xff] 0.0
          %390 = vst [vmem:[#allocation4 + $0x80] sm:$0xff] 0.0
          %391 = vst [vmem:[#allocation4 + $0x88] sm:$0xff] 0.0
          %392 = vst [vmem:[#allocation4 + $0x90] sm:$0xff] 0.0
          %393 = vst [vmem:[#allocation4 + $0x98] sm:$0xff] 0.0
          %394 = vst [vmem:[#allocation4 + $0xa0] sm:$0xff] 0.0
          %395 = vst [vmem:[#allocation4 + $0xa8] sm:$0xff] 0.0
          %396 = vst [vmem:[#allocation4 + $0xb0] sm:$0xff] 0.0
          %397 = vst [vmem:[#allocation4 + $0xb8] sm:$0xff] 0.0
          %398 = vst [vmem:[#allocation4 + $0xc0] sm:$0xff] 0.0
          %399 = vst [vmem:[#allocation4 + $0xc8] sm:$0xff] 0.0
          %400 = vst [vmem:[#allocation4 + $0xd0] sm:$0xff] 0.0
          %401 = vst [vmem:[#allocation4 + $0xd8] sm:$0xff] 0.0
          %402 = vst [vmem:[#allocation4 + $0xe0] sm:$0xff] 0.0
          %403 = vst [vmem:[#allocation4 + $0xe8] sm:$0xff] 0.0
          %404 = vst [vmem:[#allocation4 + $0xf0] sm:$0xff] 0.0
          %405 = vst [vmem:[#allocation4 + $0xf8] sm:$0xff] 0.0
          %406 = vst [vmem:[#allocation4 + $0x100] sm:$0xff] 0.0
          %407 = vst [vmem:[#allocation4 + $0x108] sm:$0xff] 0.0
          %408 = vst [vmem:[#allocation4 + $0x110] sm:$0xff] 0.0
          %409 = vst [vmem:[#allocation4 + $0x118] sm:$0xff] 0.0
          %410 = vst [vmem:[#allocation4 + $0x120] sm:$0xff] 0.0
          %411 = vst [vmem:[#allocation4 + $0x128] sm:$0xff] 0.0
          %412 = vst [vmem:[#allocation4 + $0x130] sm:$0xff] 0.0
          %413 = vst [vmem:[#allocation4 + $0x138] sm:$0xff] 0.0
          %414 = vst [vmem:[#allocation4 + $0x140] sm:$0xff] 0.0
          %415 = vst [vmem:[#allocation4 + $0x148] sm:$0xff] 0.0
          %416 = vst [vmem:[#allocation4 + $0x150] sm:$0xff] 0.0
          %417 = vst [vmem:[#allocation4 + $0x158] sm:$0xff] 0.0
          %418 = vst [vmem:[#allocation4 + $0x160] sm:$0xff] 0.0
          %419 = vst [vmem:[#allocation4 + $0x168] sm:$0xff] 0.0
          %420 = vst [vmem:[#allocation4 + $0x170] sm:$0xff] 0.0
          %421 = vst [vmem:[#allocation4 + $0x178] sm:$0xff] 0.0
          %422 = vst [vmem:[#allocation4 + $0x180] sm:$0xff] 0.0
          %423 = vst [vmem:[#allocation4 + $0x188] sm:$0xff] 0.0
          %424 = vst [vmem:[#allocation4 + $0x190] sm:$0xff] 0.0
          %425 = vst [vmem:[#allocation4 + $0x198] sm:$0xff] 0.0
          %426 = vst [vmem:[#allocation4 + $0x1a0] sm:$0xff] 0.0
          %427 = vst [vmem:[#allocation4 + $0x1a8] sm:$0xff] 0.0
          %428 = vst [vmem:[#allocation4 + $0x1b0] sm:$0xff] 0.0
          %429 = vst [vmem:[#allocation4 + $0x1b8] sm:$0xff] 0.0
          %430 = vst [vmem:[#allocation4 + $0x1c0] sm:$0xff] 0.0
          %431 = vst [vmem:[#allocation4 + $0x1c8] sm:$0xff] 0.0
          %432 = vst [vmem:[#allocation4 + $0x1d0] sm:$0xff] 0.0
          %433 = vst [vmem:[#allocation4 + $0x1d8] sm:$0xff] 0.0
          %434 = vst [vmem:[#allocation4 + $0x1e0] sm:$0xff] 0.0
          %435 = vst [vmem:[#allocation4 + $0x1e8] sm:$0xff] 0.0
          %436 = vst [vmem:[#allocation4 + $0x1f0] sm:$0xff] 0.0
          %437 = vst [vmem:[#allocation4 + $0x1f8] sm:$0xff] 0.0
        $region48: #{tpu_custom_call.1} parent=31 // pred_fallthru
          _
        %v438 = vld [vmem:[%s249] sm:$0xff]
        %v439 = vld [vmem:[%s249 + $0x8] sm:$0xff]
        %v440 = vld [vmem:[%s249 + $0x10] sm:$0xff]
        %v441 = vld [vmem:[%s249 + $0x18] sm:$0xff]
        %v442 = vld [vmem:[%s249 + $0x20] sm:$0xff]
        %v443 = vld [vmem:[%s249 + $0x28] sm:$0xff]
        %v444 = vld [vmem:[%s249 + $0x30] sm:$0xff]
        %v445 = vld [vmem:[%s249 + $0x38] sm:$0xff]
        %v446 = vld [vmem:[%s249 + $0x40] sm:$0xff]
        %v447 = vld [vmem:[%s249 + $0x48] sm:$0xff]
        %v448 = vld [vmem:[%s249 + $0x50] sm:$0xff]
        %v449 = vld [vmem:[%s249 + $0x58] sm:$0xff]
        %v450 = vld [vmem:[%s249 + $0x60] sm:$0xff]
        %v451 = vld [vmem:[%s249 + $0x68] sm:$0xff]
        %v452 = vld [vmem:[%s249 + $0x70] sm:$0xff]
        %v453 = vld [vmem:[%s249 + $0x78] sm:$0xff]
        %v454 = vld [vmem:[%s249 + $0x80] sm:$0xff]
        %v455 = vld [vmem:[%s249 + $0x88] sm:$0xff]
        %v456 = vld [vmem:[%s249 + $0x90] sm:$0xff]
        %v457 = vld [vmem:[%s249 + $0x98] sm:$0xff]
        %v458 = vld [vmem:[%s249 + $0xa0] sm:$0xff]
        %v459 = vld [vmem:[%s249 + $0xa8] sm:$0xff]
        %v460 = vld [vmem:[%s249 + $0xb0] sm:$0xff]
        %v461 = vld [vmem:[%s249 + $0xb8] sm:$0xff]
        %v462 = vld [vmem:[%s249 + $0xc0] sm:$0xff]
        %v463 = vld [vmem:[%s249 + $0xc8] sm:$0xff]
        %v464 = vld [vmem:[%s249 + $0xd0] sm:$0xff]
        %v465 = vld [vmem:[%s249 + $0xd8] sm:$0xff]
        %v466 = vld [vmem:[%s249 + $0xe0] sm:$0xff]
        %v467 = vld [vmem:[%s249 + $0xe8] sm:$0xff]
        %v468 = vld [vmem:[%s249 + $0xf0] sm:$0xff]
        %v469 = vld [vmem:[%s249 + $0xf8] sm:$0xff]
        %v470 = vmul.f32 %v438, 0.088388346
        %v471 = vmul.f32 %v439, 0.088388346
        %v472 = vmul.f32 %v440, 0.088388346
        %v473 = vmul.f32 %v441, 0.088388346
        %v474 = vmul.f32 %v442, 0.088388346
        %v475 = vmul.f32 %v443, 0.088388346
        %v476 = vmul.f32 %v444, 0.088388346
        %v477 = vmul.f32 %v445, 0.088388346
        %v478 = vmul.f32 %v446, 0.088388346
        %v479 = vmul.f32 %v447, 0.088388346
        %v480 = vmul.f32 %v448, 0.088388346
        %v481 = vmul.f32 %v449, 0.088388346
        %v482 = vmul.f32 %v450, 0.088388346
        %v483 = vmul.f32 %v451, 0.088388346
        %v484 = vmul.f32 %v452, 0.088388346
        %v485 = vmul.f32 %v453, 0.088388346
        %v486 = vmul.f32 %v454, 0.088388346
        %v487 = vmul.f32 %v455, 0.088388346
        %v488 = vmul.f32 %v456, 0.088388346
        %v489 = vmul.f32 %v457, 0.088388346
        %v490 = vmul.f32 %v458, 0.088388346
        %v491 = vmul.f32 %v459, 0.088388346
        %v492 = vmul.f32 %v460, 0.088388346
        %v493 = vmul.f32 %v461, 0.088388346
        %v494 = vmul.f32 %v462, 0.088388346
        %v495 = vmul.f32 %v463, 0.088388346
        %v496 = vmul.f32 %v464, 0.088388346
        %v497 = vmul.f32 %v465, 0.088388346
        %v498 = vmul.f32 %v466, 0.088388346
        %v499 = vmul.f32 %v467, 0.088388346
        %v500 = vmul.f32 %v468, 0.088388346
        %v501 = vmul.f32 %v469, 0.088388346
        %v502 = vpack.c.bf16 %v471, %v470
        %v503 = vpack.c.bf16 %v473, %v472
        %v504 = vpack.c.bf16 %v475, %v474
        %v505 = vpack.c.bf16 %v477, %v476
        %v506 = vpack.c.bf16 %v479, %v478
        %v507 = vpack.c.bf16 %v481, %v480
        %v508 = vpack.c.bf16 %v483, %v482
        %v509 = vpack.c.bf16 %v485, %v484
        %v510 = vpack.c.bf16 %v487, %v486
        %v511 = vpack.c.bf16 %v489, %v488
        %v512 = vpack.c.bf16 %v491, %v490
        %v513 = vpack.c.bf16 %v493, %v492
        %v514 = vpack.c.bf16 %v495, %v494
        %v515 = vpack.c.bf16 %v497, %v496
        %v516 = vpack.c.bf16 %v499, %v498
        %v517 = vpack.c.bf16 %v501, %v500
        %v518 = vld [vmem:[%s258] sm:$0xff]
        %v519 = vld [vmem:[%s258 + $0x8] sm:$0xff]
        %v520 = vld [vmem:[%s258 + $0x10] sm:$0xff]
        %v521 = vld [vmem:[%s258 + $0x18] sm:$0xff]
        %v522 = vld [vmem:[%s258 + $0x20] sm:$0xff]
        %v523 = vld [vmem:[%s258 + $0x28] sm:$0xff]
        %v524 = vld [vmem:[%s258 + $0x30] sm:$0xff]
        %v525 = vld [vmem:[%s258 + $0x38] sm:$0xff]
        %v526 = vld [vmem:[%s258 + $0x40] sm:$0xff]
        %v527 = vld [vmem:[%s258 + $0x48] sm:$0xff]
        %v528 = vld [vmem:[%s258 + $0x50] sm:$0xff]
        %v529 = vld [vmem:[%s258 + $0x58] sm:$0xff]
        %v530 = vld [vmem:[%s258 + $0x60] sm:$0xff]
        %v531 = vld [vmem:[%s258 + $0x68] sm:$0xff]
        %v532 = vld [vmem:[%s258 + $0x70] sm:$0xff]
        %v533 = vld [vmem:[%s258 + $0x78] sm:$0xff]
        %v534 = vld [vmem:[%s258 + $0x80] sm:$0xff]
        %v535 = vld [vmem:[%s258 + $0x88] sm:$0xff]
        %v536 = vld [vmem:[%s258 + $0x90] sm:$0xff]
        %v537 = vld [vmem:[%s258 + $0x98] sm:$0xff]
        %v538 = vld [vmem:[%s258 + $0xa0] sm:$0xff]
        %v539 = vld [vmem:[%s258 + $0xa8] sm:$0xff]
        %v540 = vld [vmem:[%s258 + $0xb0] sm:$0xff]
        %v541 = vld [vmem:[%s258 + $0xb8] sm:$0xff]
        %v542 = vld [vmem:[%s258 + $0xc0] sm:$0xff]
        %v543 = vld [vmem:[%s258 + $0xc8] sm:$0xff]
        %v544 = vld [vmem:[%s258 + $0xd0] sm:$0xff]
        %v545 = vld [vmem:[%s258 + $0xd8] sm:$0xff]
        %v546 = vld [vmem:[%s258 + $0xe0] sm:$0xff]
        %v547 = vld [vmem:[%s258 + $0xe8] sm:$0xff]
        %v548 = vld [vmem:[%s258 + $0xf0] sm:$0xff]
        %v549 = vld [vmem:[%s258 + $0xf8] sm:$0xff]
        %v550 = vpack.c.bf16 %v519, %v518
        %v551 = vpack.c.bf16 %v521, %v520
        %v552 = vpack.c.bf16 %v523, %v522
        %v553 = vpack.c.bf16 %v525, %v524
        %v554 = vpack.c.bf16 %v527, %v526
        %v555 = vpack.c.bf16 %v529, %v528
        %v556 = vpack.c.bf16 %v531, %v530
        %v557 = vpack.c.bf16 %v533, %v532
        %v558 = vpack.c.bf16 %v535, %v534
        %v559 = vpack.c.bf16 %v537, %v536
        %v560 = vpack.c.bf16 %v539, %v538
        %v561 = vpack.c.bf16 %v541, %v540
        %v562 = vpack.c.bf16 %v543, %v542
        %v563 = vpack.c.bf16 %v545, %v544
        %v564 = vpack.c.bf16 %v547, %v546
        %v565 = vpack.c.bf16 %v549, %v548
        %566 = vmatprep.subr.bf16.mxu0 0
        %567 = vmatpush1.bf16.xpose.msra.mxu0 %v550
        %568 = vmatprep.subr.bf16.mxu0 0
        %569 = vmatpush1.bf16.xpose.msra.mxu0 %v551
        %570 = vmatprep.subr.bf16.mxu0 0
        %571 = vmatpush1.bf16.xpose.msra.mxu0 %v552
        %572 = vmatprep.subr.bf16.mxu0 0
        %573 = vmatpush1.bf16.xpose.msra.mxu0 %v553
        %574 = vmatprep.subr.bf16.mxu0 0
        %575 = vmatpush1.bf16.xpose.msra.mxu0 %v554
        %576 = vmatprep.subr.bf16.mxu0 0
        %577 = vmatpush1.bf16.xpose.msra.mxu0 %v555
        %578 = vmatprep.subr.bf16.mxu0 0
        %579 = vmatpush1.bf16.xpose.msra.mxu0 %v556
        %580 = vmatprep.subr.bf16.mxu0 0
        %581 = vmatpush1.bf16.xpose.msra.mxu0 %v557
        %582 = vmatprep.subr.bf16.mxu0 0
        %583 = vmatpush1.bf16.xpose.msra.mxu0 %v558
        %584 = vmatprep.subr.bf16.mxu0 0
        %585 = vmatpush1.bf16.xpose.msra.mxu0 %v559
        %586 = vmatprep.subr.bf16.mxu0 0
        %587 = vmatpush1.bf16.xpose.msra.mxu0 %v560
        %588 = vmatprep.subr.bf16.mxu0 0
        %589 = vmatpush1.bf16.xpose.msra.mxu0 %v561
        %590 = vmatprep.subr.bf16.mxu0 0
        %591 = vmatpush1.bf16.xpose.msra.mxu0 %v562
        %592 = vmatprep.subr.bf16.mxu0 0
        %593 = vmatpush1.bf16.xpose.msra.mxu0 %v563
        %594 = vmatprep.subr.bf16.mxu0 0
        %595 = vmatpush1.bf16.xpose.msra.mxu0 %v564
        %596 = vmatprep.subr.bf16.mxu0 0
        %597 = vmatpush1.bf16.xpose.msra.mxu0 %v565
        %598 = vmatprep.mubr.bf16.mxu0 0
        %599 = vmatmul.mubr.bf16.gmra.mrb[0].mxu0 %v502
        %v600 = vpop.f32.mrb[0].mxu0
        %v601 = vadd.f32 0.0, %v600
        %v602 = vpop.f32.mrb[0].mxu0
        %v603 = vadd.f32 0.0, %v602
        %v604 = vpop.f32.mrb[0].mxu0
        %v605 = vadd.f32 0.0, %v604
        %v606 = vpop.f32.mrb[0].mxu0
        %v607 = vadd.f32 0.0, %v606
        %608 = vmatprep.mubr.bf16.mxu0 0
        %609 = vmatmul.mubr.bf16.gmra.mrb[0].mxu0 %v503
        %v610 = vpop.f32.mrb[0].mxu0
        %v611 = vadd.f32 0.0, %v610
        %v612 = vpop.f32.mrb[0].mxu0
        %v613 = vadd.f32 0.0, %v612
        %v614 = vpop.f32.mrb[0].mxu0
        %v615 = vadd.f32 0.0, %v614
        %v616 = vpop.f32.mrb[0].mxu0
        %v617 = vadd.f32 0.0, %v616
        %618 = vmatprep.mubr.bf16.mxu0 0
        %619 = vmatmul.mubr.bf16.gmra.mrb[0].mxu0 %v504
        %v620 = vpop.f32.mrb[0].mxu0
        %v621 = vadd.f32 0.0, %v620
        %v622 = vpop.f32.mrb[0].mxu0
        %v623 = vadd.f32 0.0, %v622
        %v624 = vpop.f32.mrb[0].mxu0
        %v625 = vadd.f32 0.0, %v624
        %v626 = vpop.f32.mrb[0].mxu0
        %v627 = vadd.f32 0.0, %v626
        %628 = vmatprep.mubr.bf16.mxu0 0
        %629 = vmatmul.mubr.bf16.gmra.mrb[0].mxu0 %v505
        %v630 = vpop.f32.mrb[0].mxu0
        %v631 = vadd.f32 0.0, %v630
        %v632 = vpop.f32.mrb[0].mxu0
        %v633 = vadd.f32 0.0, %v632
        %v634 = vpop.f32.mrb[0].mxu0
        %v635 = vadd.f32 0.0, %v634
        %v636 = vpop.f32.mrb[0].mxu0
        %v637 = vadd.f32 0.0, %v636
        %638 = vmatprep.mubr.bf16.mxu0 0
        %639 = vmatmul.mubr.bf16.gmra.mrb[0].mxu0 %v506
        %v640 = vpop.f32.mrb[0].mxu0
        %v641 = vadd.f32 0.0, %v640
        %v642 = vpop.f32.mrb[0].mxu0
        %v643 = vadd.f32 0.0, %v642
        %v644 = vpop.f32.mrb[0].mxu0
        %v645 = vadd.f32 0.0, %v644
        %v646 = vpop.f32.mrb[0].mxu0
        %v647 = vadd.f32 0.0, %v646
        %648 = vmatprep.mubr.bf16.mxu0 0
        %649 = vmatmul.mubr.bf16.gmra.mrb[0].mxu0 %v507
        %v650 = vpop.f32.mrb[0].mxu0
        %v651 = vadd.f32 0.0, %v650
        %v652 = vpop.f32.mrb[0].mxu0
        %v653 = vadd.f32 0.0, %v652
        %v654 = vpop.f32.mrb[0].mxu0
        %v655 = vadd.f32 0.0, %v654
        %v656 = vpop.f32.mrb[0].mxu0
        %v657 = vadd.f32 0.0, %v656
        %658 = vmatprep.mubr.bf16.mxu0 0
        %659 = vmatmul.mubr.bf16.gmra.mrb[0].mxu0 %v508
        %v660 = vpop.f32.mrb[0].mxu0
        %v661 = vadd.f32 0.0, %v660
        %v662 = vpop.f32.mrb[0].mxu0
        %v663 = vadd.f32 0.0, %v662
        %v664 = vpop.f32.mrb[0].mxu0
        %v665 = vadd.f32 0.0, %v664
        %v666 = vpop.f32.mrb[0].mxu0
        %v667 = vadd.f32 0.0, %v666
        %668 = vmatprep.mubr.bf16.mxu0 0
        %669 = vmatmul.mubr.bf16.gmra.mrb[0].mxu0 %v509
        %v670 = vpop.f32.mrb[0].mxu0
        %v671 = vadd.f32 0.0, %v670
        %v672 = vpop.f32.mrb[0].mxu0
        %v673 = vadd.f32 0.0, %v672
        %v674 = vpop.f32.mrb[0].mxu0
        %v675 = vadd.f32 0.0, %v674
        %v676 = vpop.f32.mrb[0].mxu0
        %v677 = vadd.f32 0.0, %v676
        %678 = vmatprep.mubr.bf16.mxu0 0
        %679 = vmatmul.mubr.bf16.gmra.mrb[0].mxu0 %v510
        %v680 = vpop.f32.mrb[0].mxu0
        %v681 = vadd.f32 0.0, %v680
        %v682 = vpop.f32.mrb[0].mxu0
        %v683 = vadd.f32 0.0, %v682
        %v684 = vpop.f32.mrb[0].mxu0
        %v685 = vadd.f32 0.0, %v684
        %v686 = vpop.f32.mrb[0].mxu0
        %v687 = vadd.f32 0.0, %v686
        %688 = vmatprep.mubr.bf16.mxu0 0
        %689 = vmatmul.mubr.bf16.gmra.mrb[0].mxu0 %v511
        %v690 = vpop.f32.mrb[0].mxu0
        %v691 = vadd.f32 0.0, %v690
        %v692 = vpop.f32.mrb[0].mxu0
        %v693 = vadd.f32 0.0, %v692
        %v694 = vpop.f32.mrb[0].mxu0
        %v695 = vadd.f32 0.0, %v694
        %v696 = vpop.f32.mrb[0].mxu0
        %v697 = vadd.f32 0.0, %v696
        %698 = vmatprep.mubr.bf16.mxu0 0
        %699 = vmatmul.mubr.bf16.gmra.mrb[0].mxu0 %v512
        %v700 = vpop.f32.mrb[0].mxu0
        %v701 = vadd.f32 0.0, %v700
        %v702 = vpop.f32.mrb[0].mxu0
        %v703 = vadd.f32 0.0, %v702
        %v704 = vpop.f32.mrb[0].mxu0
        %v705 = vadd.f32 0.0, %v704
        %v706 = vpop.f32.mrb[0].mxu0
        %v707 = vadd.f32 0.0, %v706
        %708 = vmatprep.mubr.bf16.mxu0 0
        %709 = vmatmul.mubr.bf16.gmra.mrb[0].mxu0 %v513
        %v710 = vpop.f32.mrb[0].mxu0
        %v711 = vadd.f32 0.0, %v710
        %v712 = vpop.f32.mrb[0].mxu0
        %v713 = vadd.f32 0.0, %v712
        %v714 = vpop.f32.mrb[0].mxu0
        %v715 = vadd.f32 0.0, %v714
        %v716 = vpop.f32.mrb[0].mxu0
        %v717 = vadd.f32 0.0, %v716
        %718 = vmatprep.mubr.bf16.mxu0 0
        %719 = vmatmul.mubr.bf16.gmra.mrb[0].mxu0 %v514
        %v720 = vpop.f32.mrb[0].mxu0
        %v721 = vadd.f32 0.0, %v720
        %v722 = vpop.f32.mrb[0].mxu0
        %v723 = vadd.f32 0.0, %v722
        %v724 = vpop.f32.mrb[0].mxu0
        %v725 = vadd.f32 0.0, %v724
        %v726 = vpop.f32.mrb[0].mxu0
        %v727 = vadd.f32 0.0, %v726
        %728 = vmatprep.mubr.bf16.mxu0 0
        %729 = vmatmul.mubr.bf16.gmra.mrb[0].mxu0 %v515
        %v730 = vpop.f32.mrb[0].mxu0
        %v731 = vadd.f32 0.0, %v730
        %v732 = vpop.f32.mrb[0].mxu0
        %v733 = vadd.f32 0.0, %v732
        %v734 = vpop.f32.mrb[0].mxu0
        %v735 = vadd.f32 0.0, %v734
        %v736 = vpop.f32.mrb[0].mxu0
        %v737 = vadd.f32 0.0, %v736
        %738 = vmatprep.mubr.bf16.mxu0 0
        %739 = vmatmul.mubr.bf16.gmra.mrb[0].mxu0 %v516
        %v740 = vpop.f32.mrb[0].mxu0
        %v741 = vadd.f32 0.0, %v740
        %v742 = vpop.f32.mrb[0].mxu0
        %v743 = vadd.f32 0.0, %v742
        %v744 = vpop.f32.mrb[0].mxu0
        %v745 = vadd.f32 0.0, %v744
        %v746 = vpop.f32.mrb[0].mxu0
        %v747 = vadd.f32 0.0, %v746
        %748 = vmatprep.mubr.bf16.mxu0 0
        %749 = vmatmul.mubr.bf16.gmra.mrb[0].mxu0 %v517
        %v750 = vpop.f32.mrb[0].mxu0
        %v751 = vadd.f32 0.0, %v750
        %v752 = vpop.f32.mrb[0].mxu0
        %v753 = vadd.f32 0.0, %v752
        %v754 = vpop.f32.mrb[0].mxu0
        %v755 = vadd.f32 0.0, %v754
        %v756 = vpop.f32.mrb[0].mxu0
        %v757 = vadd.f32 0.0, %v756
        %758 = vdwg.mxu0
        %v759 = vld [vmem:[#allocation2] sm:$0xff]
        %v760 = vld [vmem:[#allocation2 + $0x8] sm:$0xff]
        %v761 = vld [vmem:[#allocation2 + $0x10] sm:$0xff]
        %v762 = vld [vmem:[#allocation2 + $0x18] sm:$0xff]
        %v763 = vld [vmem:[#allocation2 + $0x20] sm:$0xff]
        %v764 = vld [vmem:[#allocation2 + $0x28] sm:$0xff]
        %v765 = vld [vmem:[#allocation2 + $0x30] sm:$0xff]
        %v766 = vld [vmem:[#allocation2 + $0x38] sm:$0xff]
        %v767 = vld [vmem:[#allocation2 + $0x40] sm:$0xff]
        %v768 = vld [vmem:[#allocation2 + $0x48] sm:$0xff]
        %v769 = vld [vmem:[#allocation2 + $0x50] sm:$0xff]
        %v770 = vld [vmem:[#allocation2 + $0x58] sm:$0xff]
        %v771 = vld [vmem:[#allocation2 + $0x60] sm:$0xff]
        %v772 = vld [vmem:[#allocation2 + $0x68] sm:$0xff]
        %v773 = vld [vmem:[#allocation2 + $0x70] sm:$0xff]
        %v774 = vld [vmem:[#allocation2 + $0x78] sm:$0xff]
        %v775 = vld [vmem:[#allocation2 + $0x80] sm:$0xff]
        %v776 = vld [vmem:[#allocation2 + $0x88] sm:$0xff]
        %v777 = vld [vmem:[#allocation2 + $0x90] sm:$0xff]
        %v778 = vld [vmem:[#allocation2 + $0x98] sm:$0xff]
        %v779 = vld [vmem:[#allocation2 + $0xa0] sm:$0xff]
        %v780 = vld [vmem:[#allocation2 + $0xa8] sm:$0xff]
        %v781 = vld [vmem:[#allocation2 + $0xb0] sm:$0xff]
        %v782 = vld [vmem:[#allocation2 + $0xb8] sm:$0xff]
        %v783 = vld [vmem:[#allocation2 + $0xc0] sm:$0xff]
        %v784 = vld [vmem:[#allocation2 + $0xc8] sm:$0xff]
        %v785 = vld [vmem:[#allocation2 + $0xd0] sm:$0xff]
        %v786 = vld [vmem:[#allocation2 + $0xd8] sm:$0xff]
        %v787 = vld [vmem:[#allocation2 + $0xe0] sm:$0xff]
        %v788 = vld [vmem:[#allocation2 + $0xe8] sm:$0xff]
        %v789 = vld [vmem:[#allocation2 + $0xf0] sm:$0xff]
        %v790 = vld [vmem:[#allocation2 + $0xf8] sm:$0xff]
        %v791 = vmax.f32 %v601, %v603
        %792 = vmax.xlane.f32.xlu0 %v791
        %v793 = vpop.xlane.xlu0 %792
        %v794 = vmax.f32 %v605, %v607
        %795 = vmax.xlane.f32.xlu0 %v794
        %v796 = vpop.xlane.xlu0 %795
        %v797 = vmax.f32 %v611, %v613
        %798 = vmax.xlane.f32.xlu0 %v797
        %v799 = vpop.xlane.xlu0 %798
        %v800 = vmax.f32 %v615, %v617
        %801 = vmax.xlane.f32.xlu0 %v800
        %v802 = vpop.xlane.xlu0 %801
        %v803 = vmax.f32 %v621, %v623
        %804 = vmax.xlane.f32.xlu0 %v803
        %v805 = vpop.xlane.xlu0 %804
        %v806 = vmax.f32 %v625, %v627
        %807 = vmax.xlane.f32.xlu0 %v806
        %v808 = vpop.xlane.xlu0 %807
        %v809 = vmax.f32 %v631, %v633
        %810 = vmax.xlane.f32.xlu0 %v809
        %v811 = vpop.xlane.xlu0 %810
        %v812 = vmax.f32 %v635, %v637
        %813 = vmax.xlane.f32.xlu0 %v812
        %v814 = vpop.xlane.xlu0 %813
        %v815 = vmax.f32 %v641, %v643
        %816 = vmax.xlane.f32.xlu0 %v815
        %v817 = vpop.xlane.xlu0 %816
        %v818 = vmax.f32 %v645, %v647
        %819 = vmax.xlane.f32.xlu0 %v818
        %v820 = vpop.xlane.xlu0 %819
        %v821 = vmax.f32 %v651, %v653
        %822 = vmax.xlane.f32.xlu0 %v821
        %v823 = vpop.xlane.xlu0 %822
        %v824 = vmax.f32 %v655, %v657
        %825 = vmax.xlane.f32.xlu0 %v824
        %v826 = vpop.xlane.xlu0 %825
        %v827 = vmax.f32 %v661, %v663
        %828 = vmax.xlane.f32.xlu0 %v827
        %v829 = vpop.xlane.xlu0 %828
        %v830 = vmax.f32 %v665, %v667
        %831 = vmax.xlane.f32.xlu0 %v830
        %v832 = vpop.xlane.xlu0 %831
        %v833 = vmax.f32 %v671, %v673
        %834 = vmax.xlane.f32.xlu0 %v833
        %v835 = vpop.xlane.xlu0 %834
        %v836 = vmax.f32 %v675, %v677
        %837 = vmax.xlane.f32.xlu0 %v836
        %v838 = vpop.xlane.xlu0 %837
        %v839 = vmax.f32 %v681, %v683
        %840 = vmax.xlane.f32.xlu0 %v839
        %v841 = vpop.xlane.xlu0 %840
        %v842 = vmax.f32 %v685, %v687
        %843 = vmax.xlane.f32.xlu0 %v842
        %v844 = vpop.xlane.xlu0 %843
        %v845 = vmax.f32 %v691, %v693
        %846 = vmax.xlane.f32.xlu0 %v845
        %v847 = vpop.xlane.xlu0 %846
        %v848 = vmax.f32 %v695, %v697
        %849 = vmax.xlane.f32.xlu0 %v848
        %v850 = vpop.xlane.xlu0 %849
        %v851 = vmax.f32 %v701, %v703
        %852 = vmax.xlane.f32.xlu0 %v851
        %v853 = vpop.xlane.xlu0 %852
        %v854 = vmax.f32 %v705, %v707
        %855 = vmax.xlane.f32.xlu0 %v854
        %v856 = vpop.xlane.xlu0 %855
        %v857 = vmax.f32 %v711, %v713
        %858 = vmax.xlane.f32.xlu0 %v857
        %v859 = vpop.xlane.xlu0 %858
        %v860 = vmax.f32 %v715, %v717
        %861 = vmax.xlane.f32.xlu0 %v860
        %v862 = vpop.xlane.xlu0 %861
        %v863 = vmax.f32 %v721, %v723
        %864 = vmax.xlane.f32.xlu0 %v863
        %v865 = vpop.xlane.xlu0 %864
        %v866 = vmax.f32 %v725, %v727
        %867 = vmax.xlane.f32.xlu0 %v866
        %v868 = vpop.xlane.xlu0 %867
        %v869 = vmax.f32 %v731, %v733
        %870 = vmax.xlane.f32.xlu0 %v869
        %v871 = vpop.xlane.xlu0 %870
        %v872 = vmax.f32 %v735, %v737
        %873 = vmax.xlane.f32.xlu0 %v872
        %v874 = vpop.xlane.xlu0 %873
        %v875 = vmax.f32 %v741, %v743
        %876 = vmax.xlane.f32.xlu0 %v875
        %v877 = vpop.xlane.xlu0 %876
        %v878 = vmax.f32 %v745, %v747
        %879 = vmax.xlane.f32.xlu0 %v878
        %v880 = vpop.xlane.xlu0 %879
        %v881 = vmax.f32 %v751, %v753
        %882 = vmax.xlane.f32.xlu0 %v881
        %v883 = vpop.xlane.xlu0 %882
        %v884 = vmax.f32 %v755, %v757
        %885 = vmax.xlane.f32.xlu0 %v884
        %v886 = vpop.xlane.xlu0 %885
        %v887 = vmax.f32 %v759, %v793
        %v888 = vmax.f32 %v760, %v796
        %v889 = vmax.f32 %v761, %v799
        %v890 = vmax.f32 %v762, %v802
        %v891 = vmax.f32 %v763, %v805
        %v892 = vmax.f32 %v764, %v808
        %v893 = vmax.f32 %v765, %v811
        %v894 = vmax.f32 %v766, %v814
        %v895 = vmax.f32 %v767, %v817
        %v896 = vmax.f32 %v768, %v820
        %v897 = vmax.f32 %v769, %v823
        %v898 = vmax.f32 %v770, %v826
        %v899 = vmax.f32 %v771, %v829
        %v900 = vmax.f32 %v772, %v832
        %v901 = vmax.f32 %v773, %v835
        %v902 = vmax.f32 %v774, %v838
        %v903 = vmax.f32 %v775, %v841
        %v904 = vmax.f32 %v776, %v844
        %v905 = vmax.f32 %v777, %v847
        %v906 = vmax.f32 %v778, %v850
        %v907 = vmax.f32 %v779, %v853
        %v908 = vmax.f32 %v780, %v856
        %v909 = vmax.f32 %v781, %v859
        %v910 = vmax.f32 %v782, %v862
        %v911 = vmax.f32 %v783, %v865
        %v912 = vmax.f32 %v784, %v868
        %v913 = vmax.f32 %v785, %v871
        %v914 = vmax.f32 %v786, %v874
        %v915 = vmax.f32 %v787, %v877
        %v916 = vmax.f32 %v788, %v880
        %v917 = vmax.f32 %v789, %v883
        %v918 = vmax.f32 %v790, %v886
        %v919 = vsub.f32 %v759, %v887
        %v920 = vsub.f32 %v760, %v888
        %v921 = vsub.f32 %v761, %v889
        %v922 = vsub.f32 %v762, %v890
        %v923 = vsub.f32 %v763, %v891
        %v924 = vsub.f32 %v764, %v892
        %v925 = vsub.f32 %v765, %v893
        %v926 = vsub.f32 %v766, %v894
        %v927 = vsub.f32 %v767, %v895
        %v928 = vsub.f32 %v768, %v896
        %v929 = vsub.f32 %v769, %v897
        %v930 = vsub.f32 %v770, %v898
        %v931 = vsub.f32 %v771, %v899
        %v932 = vsub.f32 %v772, %v900
        %v933 = vsub.f32 %v773, %v901
        %v934 = vsub.f32 %v774, %v902
        %v935 = vsub.f32 %v775, %v903
        %v936 = vsub.f32 %v776, %v904
        %v937 = vsub.f32 %v777, %v905
        %v938 = vsub.f32 %v778, %v906
        %v939 = vsub.f32 %v779, %v907
        %v940 = vsub.f32 %v780, %v908
        %v941 = vsub.f32 %v781, %v909
        %v942 = vsub.f32 %v782, %v910
        %v943 = vsub.f32 %v783, %v911
        %v944 = vsub.f32 %v784, %v912
        %v945 = vsub.f32 %v785, %v913
        %v946 = vsub.f32 %v786, %v914
        %v947 = vsub.f32 %v787, %v915
        %v948 = vsub.f32 %v788, %v916
        %v949 = vsub.f32 %v789, %v917
        %v950 = vsub.f32 %v790, %v918
        %v951 = vmul.f32 %v919, 1.442695
        %v952 = vpow.pop %v951
        %v953 = vmul.f32 %v920, 1.442695
        %v954 = vpow.pop %v953
        %v955 = vmul.f32 %v921, 1.442695
        %v956 = vpow.pop %v955
        %v957 = vmul.f32 %v922, 1.442695
        %v958 = vpow.pop %v957
        %v959 = vmul.f32 %v923, 1.442695
        %v960 = vpow.pop %v959
        %v961 = vmul.f32 %v924, 1.442695
        %v962 = vpow.pop %v961
        %v963 = vmul.f32 %v925, 1.442695
        %v964 = vpow.pop %v963
        %v965 = vmul.f32 %v926, 1.442695
        %v966 = vpow.pop %v965
        %v967 = vmul.f32 %v927, 1.442695
        %v968 = vpow.pop %v967
        %v969 = vmul.f32 %v928, 1.442695
        %v970 = vpow.pop %v969
        %v971 = vmul.f32 %v929, 1.442695
        %v972 = vpow.pop %v971
        %v973 = vmul.f32 %v930, 1.442695
        %v974 = vpow.pop %v973
        %v975 = vmul.f32 %v931, 1.442695
        %v976 = vpow.pop %v975
        %v977 = vmul.f32 %v932, 1.442695
        %v978 = vpow.pop %v977
        %v979 = vmul.f32 %v933, 1.442695
        %v980 = vpow.pop %v979
        %v981 = vmul.f32 %v934, 1.442695
        %v982 = vpow.pop %v981
        %v983 = vmul.f32 %v935, 1.442695
        %v984 = vpow.pop %v983
        %v985 = vmul.f32 %v936, 1.442695
        %v986 = vpow.pop %v985
        %v987 = vmul.f32 %v937, 1.442695
        %v988 = vpow.pop %v987
        %v989 = vmul.f32 %v938, 1.442695
        %v990 = vpow.pop %v989
        %v991 = vmul.f32 %v939, 1.442695
        %v992 = vpow.pop %v991
        %v993 = vmul.f32 %v940, 1.442695
        %v994 = vpow.pop %v993
        %v995 = vmul.f32 %v941, 1.442695
        %v996 = vpow.pop %v995
        %v997 = vmul.f32 %v942, 1.442695
        %v998 = vpow.pop %v997
        %v999 = vmul.f32 %v943, 1.442695
        %v1000 = vpow.pop %v999
        %v1001 = vmul.f32 %v944, 1.442695
        %v1002 = vpow.pop %v1001
        %v1003 = vmul.f32 %v945, 1.442695
        %v1004 = vpow.pop %v1003
        %v1005 = vmul.f32 %v946, 1.442695
        %v1006 = vpow.pop %v1005
        %v1007 = vmul.f32 %v947, 1.442695
        %v1008 = vpow.pop %v1007
        %v1009 = vmul.f32 %v948, 1.442695
        %v1010 = vpow.pop %v1009
        %v1011 = vmul.f32 %v949, 1.442695
        %v1012 = vpow.pop %v1011
        %v1013 = vmul.f32 %v950, 1.442695
        %v1014 = vpow.pop %v1013
        %1016 = vset.pattern.permute.xlu0 0
        %1017 = vperm.xlu0 %1016, %v887
        %v1018 = vpop.permute.xlu0 %1017
        %1021 = vset.pattern.permute.xlu0 0
        %1022 = vperm.xlu0 %1021, %v888
        %v1023 = vpop.permute.xlu0 %1022
        %1026 = vset.pattern.permute.xlu0 0
        %1027 = vperm.xlu0 %1026, %v889
        %v1028 = vpop.permute.xlu0 %1027
        %1031 = vset.pattern.permute.xlu0 0
        %1032 = vperm.xlu0 %1031, %v890
        %v1033 = vpop.permute.xlu0 %1032
        %1036 = vset.pattern.permute.xlu0 0
        %1037 = vperm.xlu0 %1036, %v891
        %v1038 = vpop.permute.xlu0 %1037
        %1041 = vset.pattern.permute.xlu0 0
        %1042 = vperm.xlu0 %1041, %v892
        %v1043 = vpop.permute.xlu0 %1042
        %1046 = vset.pattern.permute.xlu0 0
        %1047 = vperm.xlu0 %1046, %v893
        %v1048 = vpop.permute.xlu0 %1047
        %1051 = vset.pattern.permute.xlu0 0
        %1052 = vperm.xlu0 %1051, %v894
        %v1053 = vpop.permute.xlu0 %1052
        %1056 = vset.pattern.permute.xlu0 0
        %1057 = vperm.xlu0 %1056, %v895
        %v1058 = vpop.permute.xlu0 %1057
        %1061 = vset.pattern.permute.xlu0 0
        %1062 = vperm.xlu0 %1061, %v896
        %v1063 = vpop.permute.xlu0 %1062
        %1066 = vset.pattern.permute.xlu0 0
        %1067 = vperm.xlu0 %1066, %v897
        %v1068 = vpop.permute.xlu0 %1067
        %1071 = vset.pattern.permute.xlu0 0
        %1072 = vperm.xlu0 %1071, %v898
        %v1073 = vpop.permute.xlu0 %1072
        %1076 = vset.pattern.permute.xlu0 0
        %1077 = vperm.xlu0 %1076, %v899
        %v1078 = vpop.permute.xlu0 %1077
        %1081 = vset.pattern.permute.xlu0 0
        %1082 = vperm.xlu0 %1081, %v900
        %v1083 = vpop.permute.xlu0 %1082
        %1086 = vset.pattern.permute.xlu0 0
        %1087 = vperm.xlu0 %1086, %v901
        %v1088 = vpop.permute.xlu0 %1087
        %1091 = vset.pattern.permute.xlu0 0
        %1092 = vperm.xlu0 %1091, %v902
        %v1093 = vpop.permute.xlu0 %1092
        %1096 = vset.pattern.permute.xlu0 0
        %1097 = vperm.xlu0 %1096, %v903
        %v1098 = vpop.permute.xlu0 %1097
        %1101 = vset.pattern.permute.xlu0 0
        %1102 = vperm.xlu0 %1101, %v904
        %v1103 = vpop.permute.xlu0 %1102
        %1106 = vset.pattern.permute.xlu0 0
        %1107 = vperm.xlu0 %1106, %v905
        %v1108 = vpop.permute.xlu0 %1107
        %1111 = vset.pattern.permute.xlu0 0
        %1112 = vperm.xlu0 %1111, %v906
        %v1113 = vpop.permute.xlu0 %1112
        %1116 = vset.pattern.permute.xlu0 0
        %1117 = vperm.xlu0 %1116, %v907
        %v1118 = vpop.permute.xlu0 %1117
        %1121 = vset.pattern.permute.xlu0 0
        %1122 = vperm.xlu0 %1121, %v908
        %v1123 = vpop.permute.xlu0 %1122
        %1126 = vset.pattern.permute.xlu0 0
        %1127 = vperm.xlu0 %1126, %v909
        %v1128 = vpop.permute.xlu0 %1127
        %1131 = vset.pattern.permute.xlu0 0
        %1132 = vperm.xlu0 %1131, %v910
        %v1133 = vpop.permute.xlu0 %1132
        %1136 = vset.pattern.permute.xlu0 0
        %1137 = vperm.xlu0 %1136, %v911
        %v1138 = vpop.permute.xlu0 %1137
        %1141 = vset.pattern.permute.xlu0 0
        %1142 = vperm.xlu0 %1141, %v912
        %v1143 = vpop.permute.xlu0 %1142
        %1146 = vset.pattern.permute.xlu0 0
        %1147 = vperm.xlu0 %1146, %v913
        %v1148 = vpop.permute.xlu0 %1147
        %1151 = vset.pattern.permute.xlu0 0
        %1152 = vperm.xlu0 %1151, %v914
        %v1153 = vpop.permute.xlu0 %1152
        %1156 = vset.pattern.permute.xlu0 0
        %1157 = vperm.xlu0 %1156, %v915
        %v1158 = vpop.permute.xlu0 %1157
        %1161 = vset.pattern.permute.xlu0 0
        %1162 = vperm.xlu0 %1161, %v916
        %v1163 = vpop.permute.xlu0 %1162
        %1166 = vset.pattern.permute.xlu0 0
        %1167 = vperm.xlu0 %1166, %v917
        %v1168 = vpop.permute.xlu0 %1167
        %1171 = vset.pattern.permute.xlu0 0
        %1172 = vperm.xlu0 %1171, %v918
        %v1173 = vpop.permute.xlu0 %1172
        %v1175 = vsub.f32 %v601, %v1018
        %v1176 = vsub.f32 %v603, %v1018
        %v1177 = vsub.f32 %v605, %v1023
        %v1178 = vsub.f32 %v607, %v1023
        %v1179 = vsub.f32 %v611, %v1028
        %v1180 = vsub.f32 %v613, %v1028
        %v1181 = vsub.f32 %v615, %v1033
        %v1182 = vsub.f32 %v617, %v1033
        %v1183 = vsub.f32 %v621, %v1038
        %v1184 = vsub.f32 %v623, %v1038
        %v1185 = vsub.f32 %v625, %v1043
        %v1186 = vsub.f32 %v627, %v1043
        %v1187 = vsub.f32 %v631, %v1048
        %v1188 = vsub.f32 %v633, %v1048
        %v1189 = vsub.f32 %v635, %v1053
        %v1190 = vsub.f32 %v637, %v1053
        %v1191 = vsub.f32 %v641, %v1058
        %v1192 = vsub.f32 %v643, %v1058
        %v1193 = vsub.f32 %v645, %v1063
        %v1194 = vsub.f32 %v647, %v1063
        %v1195 = vsub.f32 %v651, %v1068
        %v1196 = vsub.f32 %v653, %v1068
        %v1197 = vsub.f32 %v655, %v1073
        %v1198 = vsub.f32 %v657, %v1073
        %v1199 = vsub.f32 %v661, %v1078
        %v1200 = vsub.f32 %v663, %v1078
        %v1201 = vsub.f32 %v665, %v1083
        %v1202 = vsub.f32 %v667, %v1083
        %v1203 = vsub.f32 %v671, %v1088
        %v1204 = vsub.f32 %v673, %v1088
        %v1205 = vsub.f32 %v675, %v1093
        %v1206 = vsub.f32 %v677, %v1093
        %v1207 = vsub.f32 %v681, %v1098
        %v1208 = vsub.f32 %v683, %v1098
        %v1209 = vsub.f32 %v685, %v1103
        %v1210 = vsub.f32 %v687, %v1103
        %v1211 = vsub.f32 %v691, %v1108
        %v1212 = vsub.f32 %v693, %v1108
        %v1213 = vsub.f32 %v695, %v1113
        %v1214 = vsub.f32 %v697, %v1113
        %v1215 = vsub.f32 %v701, %v1118
        %v1216 = vsub.f32 %v703, %v1118
        %v1217 = vsub.f32 %v705, %v1123
        %v1218 = vsub.f32 %v707, %v1123
        %v1219 = vsub.f32 %v711, %v1128
        %v1220 = vsub.f32 %v713, %v1128
        %v1221 = vsub.f32 %v715, %v1133
        %v1222 = vsub.f32 %v717, %v1133
        %v1223 = vsub.f32 %v721, %v1138
        %v1224 = vsub.f32 %v723, %v1138
        %v1225 = vsub.f32 %v725, %v1143
        %v1226 = vsub.f32 %v727, %v1143
        %v1227 = vsub.f32 %v731, %v1148
        %v1228 = vsub.f32 %v733, %v1148
        %v1229 = vsub.f32 %v735, %v1153
        %v1230 = vsub.f32 %v737, %v1153
        %v1231 = vsub.f32 %v741, %v1158
        %v1232 = vsub.f32 %v743, %v1158
        %v1233 = vsub.f32 %v745, %v1163
        %v1234 = vsub.f32 %v747, %v1163
        %v1235 = vsub.f32 %v751, %v1168
        %v1236 = vsub.f32 %v753, %v1168
        %v1237 = vsub.f32 %v755, %v1173
        %v1238 = vsub.f32 %v757, %v1173
        %v1239 = vmul.f32 %v1175, 1.442695
        %v1240 = vpow.pop %v1239
        %v1241 = vmul.f32 %v1176, 1.442695
        %v1242 = vpow.pop %v1241
        %v1243 = vmul.f32 %v1177, 1.442695
        %v1244 = vpow.pop %v1243
        %v1245 = vmul.f32 %v1178, 1.442695
        %v1246 = vpow.pop %v1245
        %v1247 = vmul.f32 %v1179, 1.442695
        %v1248 = vpow.pop %v1247
        %v1249 = vmul.f32 %v1180, 1.442695
        %v1250 = vpow.pop %v1249
        %v1251 = vmul.f32 %v1181, 1.442695
        %v1252 = vpow.pop %v1251
        %v1253 = vmul.f32 %v1182, 1.442695
        %v1254 = vpow.pop %v1253
        %v1255 = vmul.f32 %v1183, 1.442695
        %v1256 = vpow.pop %v1255
        %v1257 = vmul.f32 %v1184, 1.442695
        %v1258 = vpow.pop %v1257
        %v1259 = vmul.f32 %v1185, 1.442695
        %v1260 = vpow.pop %v1259
        %v1261 = vmul.f32 %v1186, 1.442695
        %v1262 = vpow.pop %v1261
        %v1263 = vmul.f32 %v1187, 1.442695
        %v1264 = vpow.pop %v1263
        %v1265 = vmul.f32 %v1188, 1.442695
        %v1266 = vpow.pop %v1265
        %v1267 = vmul.f32 %v1189, 1.442695
        %v1268 = vpow.pop %v1267
        %v1269 = vmul.f32 %v1190, 1.442695
        %v1270 = vpow.pop %v1269
        %v1271 = vmul.f32 %v1191, 1.442695
        %v1272 = vpow.pop %v1271
        %v1273 = vmul.f32 %v1192, 1.442695
        %v1274 = vpow.pop %v1273
        %v1275 = vmul.f32 %v1193, 1.442695
        %v1276 = vpow.pop %v1275
        %v1277 = vmul.f32 %v1194, 1.442695
        %v1278 = vpow.pop %v1277
        %v1279 = vmul.f32 %v1195, 1.442695
        %v1280 = vpow.pop %v1279
        %v1281 = vmul.f32 %v1196, 1.442695
        %v1282 = vpow.pop %v1281
        %v1283 = vmul.f32 %v1197, 1.442695
        %v1284 = vpow.pop %v1283
        %v1285 = vmul.f32 %v1198, 1.442695
        %v1286 = vpow.pop %v1285
        %v1287 = vmul.f32 %v1199, 1.442695
        %v1288 = vpow.pop %v1287
        %v1289 = vmul.f32 %v1200, 1.442695
        %v1290 = vpow.pop %v1289
        %v1291 = vmul.f32 %v1201, 1.442695
        %v1292 = vpow.pop %v1291
        %v1293 = vmul.f32 %v1202, 1.442695
        %v1294 = vpow.pop %v1293
        %v1295 = vmul.f32 %v1203, 1.442695
        %v1296 = vpow.pop %v1295
        %v1297 = vmul.f32 %v1204, 1.442695
        %v1298 = vpow.pop %v1297
        %v1299 = vmul.f32 %v1205, 1.442695
        %v1300 = vpow.pop %v1299
        %v1301 = vmul.f32 %v1206, 1.442695
        %v1302 = vpow.pop %v1301
        %v1303 = vmul.f32 %v1207, 1.442695
        %v1304 = vpow.pop %v1303
        %v1305 = vmul.f32 %v1208, 1.442695
        %v1306 = vpow.pop %v1305
        %v1307 = vmul.f32 %v1209, 1.442695
        %v1308 = vpow.pop %v1307
        %v1309 = vmul.f32 %v1210, 1.442695
        %v1310 = vpow.pop %v1309
        %v1311 = vmul.f32 %v1211, 1.442695
        %v1312 = vpow.pop %v1311
        %v1313 = vmul.f32 %v1212, 1.442695
        %v1314 = vpow.pop %v1313
        %v1315 = vmul.f32 %v1213, 1.442695
        %v1316 = vpow.pop %v1315
        %v1317 = vmul.f32 %v1214, 1.442695
        %v1318 = vpow.pop %v1317
        %v1319 = vmul.f32 %v1215, 1.442695
        %v1320 = vpow.pop %v1319
        %v1321 = vmul.f32 %v1216, 1.442695
        %v1322 = vpow.pop %v1321
        %v1323 = vmul.f32 %v1217, 1.442695
        %v1324 = vpow.pop %v1323
        %v1325 = vmul.f32 %v1218, 1.442695
        %v1326 = vpow.pop %v1325
        %v1327 = vmul.f32 %v1219, 1.442695
        %v1328 = vpow.pop %v1327
        %v1329 = vmul.f32 %v1220, 1.442695
        %v1330 = vpow.pop %v1329
        %v1331 = vmul.f32 %v1221, 1.442695
        %v1332 = vpow.pop %v1331
        %v1333 = vmul.f32 %v1222, 1.442695
        %v1334 = vpow.pop %v1333
        %v1335 = vmul.f32 %v1223, 1.442695
        %v1336 = vpow.pop %v1335
        %v1337 = vmul.f32 %v1224, 1.442695
        %v1338 = vpow.pop %v1337
        %v1339 = vmul.f32 %v1225, 1.442695
        %v1340 = vpow.pop %v1339
        %v1341 = vmul.f32 %v1226, 1.442695
        %v1342 = vpow.pop %v1341
        %v1343 = vmul.f32 %v1227, 1.442695
        %v1344 = vpow.pop %v1343
        %v1345 = vmul.f32 %v1228, 1.442695
        %v1346 = vpow.pop %v1345
        %v1347 = vmul.f32 %v1229, 1.442695
        %v1348 = vpow.pop %v1347
        %v1349 = vmul.f32 %v1230, 1.442695
        %v1350 = vpow.pop %v1349
        %v1351 = vmul.f32 %v1231, 1.442695
        %v1352 = vpow.pop %v1351
        %v1353 = vmul.f32 %v1232, 1.442695
        %v1354 = vpow.pop %v1353
        %v1355 = vmul.f32 %v1233, 1.442695
        %v1356 = vpow.pop %v1355
        %v1357 = vmul.f32 %v1234, 1.442695
        %v1358 = vpow.pop %v1357
        %v1359 = vmul.f32 %v1235, 1.442695
        %v1360 = vpow.pop %v1359
        %v1361 = vmul.f32 %v1236, 1.442695
        %v1362 = vpow.pop %v1361
        %v1363 = vmul.f32 %v1237, 1.442695
        %v1364 = vpow.pop %v1363
        %v1365 = vmul.f32 %v1238, 1.442695
        %v1366 = vpow.pop %v1365
        %v1367 = vld [vmem:[#allocation3] sm:$0xff]
        %v1368 = vld [vmem:[#allocation3 + $0x8] sm:$0xff]
        %v1369 = vld [vmem:[#allocation3 + $0x10] sm:$0xff]
        %v1370 = vld [vmem:[#allocation3 + $0x18] sm:$0xff]
        %v1371 = vld [vmem:[#allocation3 + $0x20] sm:$0xff]
        %v1372 = vld [vmem:[#allocation3 + $0x28] sm:$0xff]
        %v1373 = vld [vmem:[#allocation3 + $0x30] sm:$0xff]
        %v1374 = vld [vmem:[#allocation3 + $0x38] sm:$0xff]
        %v1375 = vld [vmem:[#allocation3 + $0x40] sm:$0xff]
        %v1376 = vld [vmem:[#allocation3 + $0x48] sm:$0xff]
        %v1377 = vld [vmem:[#allocation3 + $0x50] sm:$0xff]
        %v1378 = vld [vmem:[#allocation3 + $0x58] sm:$0xff]
        %v1379 = vld [vmem:[#allocation3 + $0x60] sm:$0xff]
        %v1380 = vld [vmem:[#allocation3 + $0x68] sm:$0xff]
        %v1381 = vld [vmem:[#allocation3 + $0x70] sm:$0xff]
        %v1382 = vld [vmem:[#allocation3 + $0x78] sm:$0xff]
        %v1383 = vld [vmem:[#allocation3 + $0x80] sm:$0xff]
        %v1384 = vld [vmem:[#allocation3 + $0x88] sm:$0xff]
        %v1385 = vld [vmem:[#allocation3 + $0x90] sm:$0xff]
        %v1386 = vld [vmem:[#allocation3 + $0x98] sm:$0xff]
        %v1387 = vld [vmem:[#allocation3 + $0xa0] sm:$0xff]
        %v1388 = vld [vmem:[#allocation3 + $0xa8] sm:$0xff]
        %v1389 = vld [vmem:[#allocation3 + $0xb0] sm:$0xff]
        %v1390 = vld [vmem:[#allocation3 + $0xb8] sm:$0xff]
        %v1391 = vld [vmem:[#allocation3 + $0xc0] sm:$0xff]
        %v1392 = vld [vmem:[#allocation3 + $0xc8] sm:$0xff]
        %v1393 = vld [vmem:[#allocation3 + $0xd0] sm:$0xff]
        %v1394 = vld [vmem:[#allocation3 + $0xd8] sm:$0xff]
        %v1395 = vld [vmem:[#allocation3 + $0xe0] sm:$0xff]
        %v1396 = vld [vmem:[#allocation3 + $0xe8] sm:$0xff]
        %v1397 = vld [vmem:[#allocation3 + $0xf0] sm:$0xff]
        %v1398 = vld [vmem:[#allocation3 + $0xf8] sm:$0xff]
        %v1399 = vmul.f32 %v952, %v1367
        %v1400 = vmul.f32 %v954, %v1368
        %v1401 = vmul.f32 %v956, %v1369
        %v1402 = vmul.f32 %v958, %v1370
        %v1403 = vmul.f32 %v960, %v1371
        %v1404 = vmul.f32 %v962, %v1372
        %v1405 = vmul.f32 %v964, %v1373
        %v1406 = vmul.f32 %v966, %v1374
        %v1407 = vmul.f32 %v968, %v1375
        %v1408 = vmul.f32 %v970, %v1376
        %v1409 = vmul.f32 %v972, %v1377
        %v1410 = vmul.f32 %v974, %v1378
        %v1411 = vmul.f32 %v976, %v1379
        %v1412 = vmul.f32 %v978, %v1380
        %v1413 = vmul.f32 %v980, %v1381
        %v1414 = vmul.f32 %v982, %v1382
        %v1415 = vmul.f32 %v984, %v1383
        %v1416 = vmul.f32 %v986, %v1384
        %v1417 = vmul.f32 %v988, %v1385
        %v1418 = vmul.f32 %v990, %v1386
        %v1419 = vmul.f32 %v992, %v1387
        %v1420 = vmul.f32 %v994, %v1388
        %v1421 = vmul.f32 %v996, %v1389
        %v1422 = vmul.f32 %v998, %v1390
        %v1423 = vmul.f32 %v1000, %v1391
        %v1424 = vmul.f32 %v1002, %v1392
        %v1425 = vmul.f32 %v1004, %v1393
        %v1426 = vmul.f32 %v1006, %v1394
        %v1427 = vmul.f32 %v1008, %v1395
        %v1428 = vmul.f32 %v1010, %v1396
        %v1429 = vmul.f32 %v1012, %v1397
        %v1430 = vmul.f32 %v1014, %v1398
        %v1431 = vadd.f32 %v1240, %v1242
        %1432 = vadd.xlane.f32.xlu0 %v1431
        %v1433 = vpop.xlane.xlu0 %1432
        %v1434 = vadd.f32 %v1244, %v1246
        %1435 = vadd.xlane.f32.xlu0 %v1434
        %v1436 = vpop.xlane.xlu0 %1435
        %v1437 = vadd.f32 %v1248, %v1250
        %1438 = vadd.xlane.f32.xlu0 %v1437
        %v1439 = vpop.xlane.xlu0 %1438
        %v1440 = vadd.f32 %v1252, %v1254
        %1441 = vadd.xlane.f32.xlu0 %v1440
        %v1442 = vpop.xlane.xlu0 %1441
        %v1443 = vadd.f32 %v1256, %v1258
        %1444 = vadd.xlane.f32.xlu0 %v1443
        %v1445 = vpop.xlane.xlu0 %1444
        %v1446 = vadd.f32 %v1260, %v1262
        %1447 = vadd.xlane.f32.xlu0 %v1446
        %v1448 = vpop.xlane.xlu0 %1447
        %v1449 = vadd.f32 %v1264, %v1266
        %1450 = vadd.xlane.f32.xlu0 %v1449
        %v1451 = vpop.xlane.xlu0 %1450
        %v1452 = vadd.f32 %v1268, %v1270
        %1453 = vadd.xlane.f32.xlu0 %v1452
        %v1454 = vpop.xlane.xlu0 %1453
        %v1455 = vadd.f32 %v1272, %v1274
        %1456 = vadd.xlane.f32.xlu0 %v1455
        %v1457 = vpop.xlane.xlu0 %1456
        %v1458 = vadd.f32 %v1276, %v1278
        %1459 = vadd.xlane.f32.xlu0 %v1458
        %v1460 = vpop.xlane.xlu0 %1459
        %v1461 = vadd.f32 %v1280, %v1282
        %1462 = vadd.xlane.f32.xlu0 %v1461
        %v1463 = vpop.xlane.xlu0 %1462
        %v1464 = vadd.f32 %v1284, %v1286
        %1465 = vadd.xlane.f32.xlu0 %v1464
        %v1466 = vpop.xlane.xlu0 %1465
        %v1467 = vadd.f32 %v1288, %v1290
        %1468 = vadd.xlane.f32.xlu0 %v1467
        %v1469 = vpop.xlane.xlu0 %1468
        %v1470 = vadd.f32 %v1292, %v1294
        %1471 = vadd.xlane.f32.xlu0 %v1470
        %v1472 = vpop.xlane.xlu0 %1471
        %v1473 = vadd.f32 %v1296, %v1298
        %1474 = vadd.xlane.f32.xlu0 %v1473
        %v1475 = vpop.xlane.xlu0 %1474
        %v1476 = vadd.f32 %v1300, %v1302
        %1477 = vadd.xlane.f32.xlu0 %v1476
        %v1478 = vpop.xlane.xlu0 %1477
        %v1479 = vadd.f32 %v1304, %v1306
        %1480 = vadd.xlane.f32.xlu0 %v1479
        %v1481 = vpop.xlane.xlu0 %1480
        %v1482 = vadd.f32 %v1308, %v1310
        %1483 = vadd.xlane.f32.xlu0 %v1482
        %v1484 = vpop.xlane.xlu0 %1483
        %v1485 = vadd.f32 %v1312, %v1314
        %1486 = vadd.xlane.f32.xlu0 %v1485
        %v1487 = vpop.xlane.xlu0 %1486
        %v1488 = vadd.f32 %v1316, %v1318
        %1489 = vadd.xlane.f32.xlu0 %v1488
        %v1490 = vpop.xlane.xlu0 %1489
        %v1491 = vadd.f32 %v1320, %v1322
        %1492 = vadd.xlane.f32.xlu0 %v1491
        %v1493 = vpop.xlane.xlu0 %1492
        %v1494 = vadd.f32 %v1324, %v1326
        %1495 = vadd.xlane.f32.xlu0 %v1494
        %v1496 = vpop.xlane.xlu0 %1495
        %v1497 = vadd.f32 %v1328, %v1330
        %1498 = vadd.xlane.f32.xlu0 %v1497
        %v1499 = vpop.xlane.xlu0 %1498
        %v1500 = vadd.f32 %v1332, %v1334
        %1501 = vadd.xlane.f32.xlu0 %v1500
        %v1502 = vpop.xlane.xlu0 %1501
        %v1503 = vadd.f32 %v1336, %v1338
        %1504 = vadd.xlane.f32.xlu0 %v1503
        %v1505 = vpop.xlane.xlu0 %1504
        %v1506 = vadd.f32 %v1340, %v1342
        %1507 = vadd.xlane.f32.xlu0 %v1506
        %v1508 = vpop.xlane.xlu0 %1507
        %v1509 = vadd.f32 %v1344, %v1346
        %1510 = vadd.xlane.f32.xlu0 %v1509
        %v1511 = vpop.xlane.xlu0 %1510
        %v1512 = vadd.f32 %v1348, %v1350
        %1513 = vadd.xlane.f32.xlu0 %v1512
        %v1514 = vpop.xlane.xlu0 %1513
        %v1515 = vadd.f32 %v1352, %v1354
        %1516 = vadd.xlane.f32.xlu0 %v1515
        %v1517 = vpop.xlane.xlu0 %1516
        %v1518 = vadd.f32 %v1356, %v1358
        %1519 = vadd.xlane.f32.xlu0 %v1518
        %v1520 = vpop.xlane.xlu0 %1519
        %v1521 = vadd.f32 %v1360, %v1362
        %1522 = vadd.xlane.f32.xlu0 %v1521
        %v1523 = vpop.xlane.xlu0 %1522
        %v1524 = vadd.f32 %v1364, %v1366
        %1525 = vadd.xlane.f32.xlu0 %v1524
        %v1526 = vpop.xlane.xlu0 %1525
        %v1527 = vadd.f32 %v1399, %v1433
        %v1528 = vadd.f32 %v1400, %v1436
        %v1529 = vadd.f32 %v1401, %v1439
        %v1530 = vadd.f32 %v1402, %v1442
        %v1531 = vadd.f32 %v1403, %v1445
        %v1532 = vadd.f32 %v1404, %v1448
        %v1533 = vadd.f32 %v1405, %v1451
        %v1534 = vadd.f32 %v1406, %v1454
        %v1535 = vadd.f32 %v1407, %v1457
        %v1536 = vadd.f32 %v1408, %v1460
        %v1537 = vadd.f32 %v1409, %v1463
        %v1538 = vadd.f32 %v1410, %v1466
        %v1539 = vadd.f32 %v1411, %v1469
        %v1540 = vadd.f32 %v1412, %v1472
        %v1541 = vadd.f32 %v1413, %v1475
        %v1542 = vadd.f32 %v1414, %v1478
        %v1543 = vadd.f32 %v1415, %v1481
        %v1544 = vadd.f32 %v1416, %v1484
        %v1545 = vadd.f32 %v1417, %v1487
        %v1546 = vadd.f32 %v1418, %v1490
        %v1547 = vadd.f32 %v1419, %v1493
        %v1548 = vadd.f32 %v1420, %v1496
        %v1549 = vadd.f32 %v1421, %v1499
        %v1550 = vadd.f32 %v1422, %v1502
        %v1551 = vadd.f32 %v1423, %v1505
        %v1552 = vadd.f32 %v1424, %v1508
        %v1553 = vadd.f32 %v1425, %v1511
        %v1554 = vadd.f32 %v1426, %v1514
        %v1555 = vadd.f32 %v1427, %v1517
        %v1556 = vadd.f32 %v1428, %v1520
        %v1557 = vadd.f32 %v1429, %v1523
        %v1558 = vadd.f32 %v1430, %v1526
        %vm1559 = vcmask 7168
        %1560 = vst.msk [vmem:[#allocation3] sm:$0xff] %vm1559, %v1527
        %1561 = vst.msk [vmem:[#allocation3 + $0x8] sm:$0xff] %vm1559, %v1528
        %1562 = vst.msk [vmem:[#allocation3 + $0x10] sm:$0xff] %vm1559, %v1529
        %1563 = vst.msk [vmem:[#allocation3 + $0x18] sm:$0xff] %vm1559, %v1530
        %1564 = vst.msk [vmem:[#allocation3 + $0x20] sm:$0xff] %vm1559, %v1531
        %1565 = vst.msk [vmem:[#allocation3 + $0x28] sm:$0xff] %vm1559, %v1532
        %1566 = vst.msk [vmem:[#allocation3 + $0x30] sm:$0xff] %vm1559, %v1533
        %1567 = vst.msk [vmem:[#allocation3 + $0x38] sm:$0xff] %vm1559, %v1534
        %1568 = vst.msk [vmem:[#allocation3 + $0x40] sm:$0xff] %vm1559, %v1535
        %1569 = vst.msk [vmem:[#allocation3 + $0x48] sm:$0xff] %vm1559, %v1536
        %1570 = vst.msk [vmem:[#allocation3 + $0x50] sm:$0xff] %vm1559, %v1537
        %1571 = vst.msk [vmem:[#allocation3 + $0x58] sm:$0xff] %vm1559, %v1538
        %1572 = vst.msk [vmem:[#allocation3 + $0x60] sm:$0xff] %vm1559, %v1539
        %1573 = vst.msk [vmem:[#allocation3 + $0x68] sm:$0xff] %vm1559, %v1540
        %1574 = vst.msk [vmem:[#allocation3 + $0x70] sm:$0xff] %vm1559, %v1541
        %1575 = vst.msk [vmem:[#allocation3 + $0x78] sm:$0xff] %vm1559, %v1542
        %1576 = vst.msk [vmem:[#allocation3 + $0x80] sm:$0xff] %vm1559, %v1543
        %1577 = vst.msk [vmem:[#allocation3 + $0x88] sm:$0xff] %vm1559, %v1544
        %1578 = vst.msk [vmem:[#allocation3 + $0x90] sm:$0xff] %vm1559, %v1545
        %1579 = vst.msk [vmem:[#allocation3 + $0x98] sm:$0xff] %vm1559, %v1546
        %1580 = vst.msk [vmem:[#allocation3 + $0xa0] sm:$0xff] %vm1559, %v1547
        %1581 = vst.msk [vmem:[#allocation3 + $0xa8] sm:$0xff] %vm1559, %v1548
        %1582 = vst.msk [vmem:[#allocation3 + $0xb0] sm:$0xff] %vm1559, %v1549
        %1583 = vst.msk [vmem:[#allocation3 + $0xb8] sm:$0xff] %vm1559, %v1550
        %1584 = vst.msk [vmem:[#allocation3 + $0xc0] sm:$0xff] %vm1559, %v1551
        %1585 = vst.msk [vmem:[#allocation3 + $0xc8] sm:$0xff] %vm1559, %v1552
        %1586 = vst.msk [vmem:[#allocation3 + $0xd0] sm:$0xff] %vm1559, %v1553
        %1587 = vst.msk [vmem:[#allocation3 + $0xd8] sm:$0xff] %vm1559, %v1554
        %1588 = vst.msk [vmem:[#allocation3 + $0xe0] sm:$0xff] %vm1559, %v1555
        %1589 = vst.msk [vmem:[#allocation3 + $0xe8] sm:$0xff] %vm1559, %v1556
        %1590 = vst.msk [vmem:[#allocation3 + $0xf0] sm:$0xff] %vm1559, %v1557
        %1591 = vst.msk [vmem:[#allocation3 + $0xf8] sm:$0xff] %vm1559, %v1558
        %v1592 = vld [vmem:[#allocation4] sm:$0xff]
        %v1593 = vld [vmem:[#allocation4 + $0x8] sm:$0xff]
        %v1594 = vld [vmem:[#allocation4 + $0x10] sm:$0xff]
        %v1595 = vld [vmem:[#allocation4 + $0x18] sm:$0xff]
        %v1596 = vld [vmem:[#allocation4 + $0x20] sm:$0xff]
        %v1597 = vld [vmem:[#allocation4 + $0x28] sm:$0xff]
        %v1598 = vld [vmem:[#allocation4 + $0x30] sm:$0xff]
        %v1599 = vld [vmem:[#allocation4 + $0x38] sm:$0xff]
        %v1600 = vld [vmem:[#allocation4 + $0x40] sm:$0xff]
        %v1601 = vld [vmem:[#allocation4 + $0x48] sm:$0xff]
        %v1602 = vld [vmem:[#allocation4 + $0x50] sm:$0xff]
        %v1603 = vld [vmem:[#allocation4 + $0x58] sm:$0xff]
        %v1604 = vld [vmem:[#allocation4 + $0x60] sm:$0xff]
        %v1605 = vld [vmem:[#allocation4 + $0x68] sm:$0xff]
        %v1606 = vld [vmem:[#allocation4 + $0x70] sm:$0xff]
        %v1607 = vld [vmem:[#allocation4 + $0x78] sm:$0xff]
        %v1608 = vld [vmem:[#allocation4 + $0x80] sm:$0xff]
        %v1609 = vld [vmem:[#allocation4 + $0x88] sm:$0xff]
        %v1610 = vld [vmem:[#allocation4 + $0x90] sm:$0xff]
        %v1611 = vld [vmem:[#allocation4 + $0x98] sm:$0xff]
        %v1612 = vld [vmem:[#allocation4 + $0xa0] sm:$0xff]
        %v1613 = vld [vmem:[#allocation4 + $0xa8] sm:$0xff]
        %v1614 = vld [vmem:[#allocation4 + $0xb0] sm:$0xff]
        %v1615 = vld [vmem:[#allocation4 + $0xb8] sm:$0xff]
        %v1616 = vld [vmem:[#allocation4 + $0xc0] sm:$0xff]
        %v1617 = vld [vmem:[#allocation4 + $0xc8] sm:$0xff]
        %v1618 = vld [vmem:[#allocation4 + $0xd0] sm:$0xff]
        %v1619 = vld [vmem:[#allocation4 + $0xd8] sm:$0xff]
        %v1620 = vld [vmem:[#allocation4 + $0xe0] sm:$0xff]
        %v1621 = vld [vmem:[#allocation4 + $0xe8] sm:$0xff]
        %v1622 = vld [vmem:[#allocation4 + $0xf0] sm:$0xff]
        %v1623 = vld [vmem:[#allocation4 + $0xf8] sm:$0xff]
        %v1624 = vld [vmem:[#allocation4 + $0x100] sm:$0xff]
        %v1625 = vld [vmem:[#allocation4 + $0x108] sm:$0xff]
        %v1626 = vld [vmem:[#allocation4 + $0x110] sm:$0xff]
        %v1627 = vld [vmem:[#allocation4 + $0x118] sm:$0xff]
        %v1628 = vld [vmem:[#allocation4 + $0x120] sm:$0xff]
        %v1629 = vld [vmem:[#allocation4 + $0x128] sm:$0xff]
        %v1630 = vld [vmem:[#allocation4 + $0x130] sm:$0xff]
        %v1631 = vld [vmem:[#allocation4 + $0x138] sm:$0xff]
        %v1632 = vld [vmem:[#allocation4 + $0x140] sm:$0xff]
        %v1633 = vld [vmem:[#allocation4 + $0x148] sm:$0xff]
        %v1634 = vld [vmem:[#allocation4 + $0x150] sm:$0xff]
        %v1635 = vld [vmem:[#allocation4 + $0x158] sm:$0xff]
        %v1636 = vld [vmem:[#allocation4 + $0x160] sm:$0xff]
        %v1637 = vld [vmem:[#allocation4 + $0x168] sm:$0xff]
        %v1638 = vld [vmem:[#allocation4 + $0x170] sm:$0xff]
        %v1639 = vld [vmem:[#allocation4 + $0x178] sm:$0xff]
        %v1640 = vld [vmem:[#allocation4 + $0x180] sm:$0xff]
        %v1641 = vld [vmem:[#allocation4 + $0x188] sm:$0xff]
        %v1642 = vld [vmem:[#allocation4 + $0x190] sm:$0xff]
        %v1643 = vld [vmem:[#allocation4 + $0x198] sm:$0xff]
        %v1644 = vld [vmem:[#allocation4 + $0x1a0] sm:$0xff]
        %v1645 = vld [vmem:[#allocation4 + $0x1a8] sm:$0xff]
        %v1646 = vld [vmem:[#allocation4 + $0x1b0] sm:$0xff]
        %v1647 = vld [vmem:[#allocation4 + $0x1b8] sm:$0xff]
        %v1648 = vld [vmem:[#allocation4 + $0x1c0] sm:$0xff]
        %v1649 = vld [vmem:[#allocation4 + $0x1c8] sm:$0xff]
        %v1650 = vld [vmem:[#allocation4 + $0x1d0] sm:$0xff]
        %v1651 = vld [vmem:[#allocation4 + $0x1d8] sm:$0xff]
        %v1652 = vld [vmem:[#allocation4 + $0x1e0] sm:$0xff]
        %v1653 = vld [vmem:[#allocation4 + $0x1e8] sm:$0xff]
        %v1654 = vld [vmem:[#allocation4 + $0x1f0] sm:$0xff]
        %v1655 = vld [vmem:[#allocation4 + $0x1f8] sm:$0xff]
        %1657 = vset.pattern.permute.xlu0 0
        %1658 = vperm.xlu0 %1657, %v952
        %v1659 = vpop.permute.xlu0 %1658
        %1662 = vset.pattern.permute.xlu0 0
        %1663 = vperm.xlu0 %1662, %v954
        %v1664 = vpop.permute.xlu0 %1663
        %1667 = vset.pattern.permute.xlu0 0
        %1668 = vperm.xlu0 %1667, %v956
        %v1669 = vpop.permute.xlu0 %1668
        %1672 = vset.pattern.permute.xlu0 0
        %1673 = vperm.xlu0 %1672, %v958
        %v1674 = vpop.permute.xlu0 %1673
        %1677 = vset.pattern.permute.xlu0 0
        %1678 = vperm.xlu0 %1677, %v960
        %v1679 = vpop.permute.xlu0 %1678
        %1682 = vset.pattern.permute.xlu0 0
        %1683 = vperm.xlu0 %1682, %v962
        %v1684 = vpop.permute.xlu0 %1683
        %1687 = vset.pattern.permute.xlu0 0
        %1688 = vperm.xlu0 %1687, %v964
        %v1689 = vpop.permute.xlu0 %1688
        %1692 = vset.pattern.permute.xlu0 0
        %1693 = vperm.xlu0 %1692, %v966
        %v1694 = vpop.permute.xlu0 %1693
        %1697 = vset.pattern.permute.xlu0 0
        %1698 = vperm.xlu0 %1697, %v968
        %v1699 = vpop.permute.xlu0 %1698
        %1702 = vset.pattern.permute.xlu0 0
        %1703 = vperm.xlu0 %1702, %v970
        %v1704 = vpop.permute.xlu0 %1703
        %1707 = vset.pattern.permute.xlu0 0
        %1708 = vperm.xlu0 %1707, %v972
        %v1709 = vpop.permute.xlu0 %1708
        %1712 = vset.pattern.permute.xlu0 0
        %1713 = vperm.xlu0 %1712, %v974
        %v1714 = vpop.permute.xlu0 %1713
        %1717 = vset.pattern.permute.xlu0 0
        %1718 = vperm.xlu0 %1717, %v976
        %v1719 = vpop.permute.xlu0 %1718
        %1722 = vset.pattern.permute.xlu0 0
        %1723 = vperm.xlu0 %1722, %v978
        %v1724 = vpop.permute.xlu0 %1723
        %1727 = vset.pattern.permute.xlu0 0
        %1728 = vperm.xlu0 %1727, %v980
        %v1729 = vpop.permute.xlu0 %1728
        %1732 = vset.pattern.permute.xlu0 0
        %1733 = vperm.xlu0 %1732, %v982
        %v1734 = vpop.permute.xlu0 %1733
        %1737 = vset.pattern.permute.xlu0 0
        %1738 = vperm.xlu0 %1737, %v984
        %v1739 = vpop.permute.xlu0 %1738
        %1742 = vset.pattern.permute.xlu0 0
        %1743 = vperm.xlu0 %1742, %v986
        %v1744 = vpop.permute.xlu0 %1743
        %1747 = vset.pattern.permute.xlu0 0
        %1748 = vperm.xlu0 %1747, %v988
        %v1749 = vpop.permute.xlu0 %1748
        %1752 = vset.pattern.permute.xlu0 0
        %1753 = vperm.xlu0 %1752, %v990
        %v1754 = vpop.permute.xlu0 %1753
        %1757 = vset.pattern.permute.xlu0 0
        %1758 = vperm.xlu0 %1757, %v992
        %v1759 = vpop.permute.xlu0 %1758
        %1762 = vset.pattern.permute.xlu0 0
        %1763 = vperm.xlu0 %1762, %v994
        %v1764 = vpop.permute.xlu0 %1763
        %1767 = vset.pattern.permute.xlu0 0
        %1768 = vperm.xlu0 %1767, %v996
        %v1769 = vpop.permute.xlu0 %1768
        %1772 = vset.pattern.permute.xlu0 0
        %1773 = vperm.xlu0 %1772, %v998
        %v1774 = vpop.permute.xlu0 %1773
        %1777 = vset.pattern.permute.xlu0 0
        %1778 = vperm.xlu0 %1777, %v1000
        %v1779 = vpop.permute.xlu0 %1778
        %1782 = vset.pattern.permute.xlu0 0
        %1783 = vperm.xlu0 %1782, %v1002
        %v1784 = vpop.permute.xlu0 %1783
        %1787 = vset.pattern.permute.xlu0 0
        %1788 = vperm.xlu0 %1787, %v1004
        %v1789 = vpop.permute.xlu0 %1788
        %1792 = vset.pattern.permute.xlu0 0
        %1793 = vperm.xlu0 %1792, %v1006
        %v1794 = vpop.permute.xlu0 %1793
        %1797 = vset.pattern.permute.xlu0 0
        %1798 = vperm.xlu0 %1797, %v1008
        %v1799 = vpop.permute.xlu0 %1798
        %1802 = vset.pattern.permute.xlu0 0
        %1803 = vperm.xlu0 %1802, %v1010
        %v1804 = vpop.permute.xlu0 %1803
        %1807 = vset.pattern.permute.xlu0 0
        %1808 = vperm.xlu0 %1807, %v1012
        %v1809 = vpop.permute.xlu0 %1808
        %1812 = vset.pattern.permute.xlu0 0
        %1813 = vperm.xlu0 %1812, %v1014
        %v1814 = vpop.permute.xlu0 %1813
        %v1816 = vmul.f32 %v1659, %v1592
        %v1817 = vmul.f32 %v1659, %v1593
        %v1818 = vmul.f32 %v1664, %v1594
        %v1819 = vmul.f32 %v1664, %v1595
        %v1820 = vmul.f32 %v1669, %v1596
        %v1821 = vmul.f32 %v1669, %v1597
        %v1822 = vmul.f32 %v1674, %v1598
        %v1823 = vmul.f32 %v1674, %v1599
        %v1824 = vmul.f32 %v1679, %v1600
        %v1825 = vmul.f32 %v1679, %v1601
        %v1826 = vmul.f32 %v1684, %v1602
        %v1827 = vmul.f32 %v1684, %v1603
        %v1828 = vmul.f32 %v1689, %v1604
        %v1829 = vmul.f32 %v1689, %v1605
        %v1830 = vmul.f32 %v1694, %v1606
        %v1831 = vmul.f32 %v1694, %v1607
        %v1832 = vmul.f32 %v1699, %v1608
        %v1833 = vmul.f32 %v1699, %v1609
        %v1834 = vmul.f32 %v1704, %v1610
        %v1835 = vmul.f32 %v1704, %v1611
        %v1836 = vmul.f32 %v1709, %v1612
        %v1837 = vmul.f32 %v1709, %v1613
        %v1838 = vmul.f32 %v1714, %v1614
        %v1839 = vmul.f32 %v1714, %v1615
        %v1840 = vmul.f32 %v1719, %v1616
        %v1841 = vmul.f32 %v1719, %v1617
        %v1842 = vmul.f32 %v1724, %v1618
        %v1843 = vmul.f32 %v1724, %v1619
        %v1844 = vmul.f32 %v1729, %v1620
        %v1845 = vmul.f32 %v1729, %v1621
        %v1846 = vmul.f32 %v1734, %v1622
        %v1847 = vmul.f32 %v1734, %v1623
        %v1848 = vmul.f32 %v1739, %v1624
        %v1849 = vmul.f32 %v1739, %v1625
        %v1850 = vmul.f32 %v1744, %v1626
        %v1851 = vmul.f32 %v1744, %v1627
        %v1852 = vmul.f32 %v1749, %v1628
        %v1853 = vmul.f32 %v1749, %v1629
        %v1854 = vmul.f32 %v1754, %v1630
        %v1855 = vmul.f32 %v1754, %v1631
        %v1856 = vmul.f32 %v1759, %v1632
        %v1857 = vmul.f32 %v1759, %v1633
        %v1858 = vmul.f32 %v1764, %v1634
        %v1859 = vmul.f32 %v1764, %v1635
        %v1860 = vmul.f32 %v1769, %v1636
        %v1861 = vmul.f32 %v1769, %v1637
        %v1862 = vmul.f32 %v1774, %v1638
        %v1863 = vmul.f32 %v1774, %v1639
        %v1864 = vmul.f32 %v1779, %v1640
        %v1865 = vmul.f32 %v1779, %v1641
        %v1866 = vmul.f32 %v1784, %v1642
        %v1867 = vmul.f32 %v1784, %v1643
        %v1868 = vmul.f32 %v1789, %v1644
        %v1869 = vmul.f32 %v1789, %v1645
        %v1870 = vmul.f32 %v1794, %v1646
        %v1871 = vmul.f32 %v1794, %v1647
        %v1872 = vmul.f32 %v1799, %v1648
        %v1873 = vmul.f32 %v1799, %v1649
        %v1874 = vmul.f32 %v1804, %v1650
        %v1875 = vmul.f32 %v1804, %v1651
        %v1876 = vmul.f32 %v1809, %v1652
        %v1877 = vmul.f32 %v1809, %v1653
        %v1878 = vmul.f32 %v1814, %v1654
        %v1879 = vmul.f32 %v1814, %v1655
        %v1880 = vpack.c.bf16 %v1244, %v1240
        %v1881 = vpack.c.bf16 %v1246, %v1242
        %v1882 = vpack.c.bf16 %v1252, %v1248
        %v1883 = vpack.c.bf16 %v1254, %v1250
        %v1884 = vpack.c.bf16 %v1260, %v1256
        %v1885 = vpack.c.bf16 %v1262, %v1258
        %v1886 = vpack.c.bf16 %v1268, %v1264
        %v1887 = vpack.c.bf16 %v1270, %v1266
        %v1888 = vpack.c.bf16 %v1276, %v1272
        %v1889 = vpack.c.bf16 %v1278, %v1274
        %v1890 = vpack.c.bf16 %v1284, %v1280
        %v1891 = vpack.c.bf16 %v1286, %v1282
        %v1892 = vpack.c.bf16 %v1292, %v1288
        %v1893 = vpack.c.bf16 %v1294, %v1290
        %v1894 = vpack.c.bf16 %v1300, %v1296
        %v1895 = vpack.c.bf16 %v1302, %v1298
        %v1896 = vpack.c.bf16 %v1308, %v1304
        %v1897 = vpack.c.bf16 %v1310, %v1306
        %v1898 = vpack.c.bf16 %v1316, %v1312
        %v1899 = vpack.c.bf16 %v1318, %v1314
        %v1900 = vpack.c.bf16 %v1324, %v1320
        %v1901 = vpack.c.bf16 %v1326, %v1322
        %v1902 = vpack.c.bf16 %v1332, %v1328
        %v1903 = vpack.c.bf16 %v1334, %v1330
        %v1904 = vpack.c.bf16 %v1340, %v1336
        %v1905 = vpack.c.bf16 %v1342, %v1338
        %v1906 = vpack.c.bf16 %v1348, %v1344
        %v1907 = vpack.c.bf16 %v1350, %v1346
        %v1908 = vpack.c.bf16 %v1356, %v1352
        %v1909 = vpack.c.bf16 %v1358, %v1354
        %v1910 = vpack.c.bf16 %v1364, %v1360
        %v1911 = vpack.c.bf16 %v1366, %v1362
        %v1912 = vld [vmem:[%s267] sm:$0xff]
        %v1913 = vld [vmem:[%s267 + $0x8] sm:$0xff]
        %v1914 = vld [vmem:[%s267 + $0x10] sm:$0xff]
        %v1915 = vld [vmem:[%s267 + $0x18] sm:$0xff]
        %v1916 = vld [vmem:[%s267 + $0x20] sm:$0xff]
        %v1917 = vld [vmem:[%s267 + $0x28] sm:$0xff]
        %v1918 = vld [vmem:[%s267 + $0x30] sm:$0xff]
        %v1919 = vld [vmem:[%s267 + $0x38] sm:$0xff]
        %v1920 = vld [vmem:[%s267 + $0x40] sm:$0xff]
        %v1921 = vld [vmem:[%s267 + $0x48] sm:$0xff]
        %v1922 = vld [vmem:[%s267 + $0x50] sm:$0xff]
        %v1923 = vld [vmem:[%s267 + $0x58] sm:$0xff]
        %v1924 = vld [vmem:[%s267 + $0x60] sm:$0xff]
        %v1925 = vld [vmem:[%s267 + $0x68] sm:$0xff]
        %v1926 = vld [vmem:[%s267 + $0x70] sm:$0xff]
        %v1927 = vld [vmem:[%s267 + $0x78] sm:$0xff]
        %v1928 = vld [vmem:[%s267 + $0x80] sm:$0xff]
        %v1929 = vld [vmem:[%s267 + $0x88] sm:$0xff]
        %v1930 = vld [vmem:[%s267 + $0x90] sm:$0xff]
        %v1931 = vld [vmem:[%s267 + $0x98] sm:$0xff]
        %v1932 = vld [vmem:[%s267 + $0xa0] sm:$0xff]
        %v1933 = vld [vmem:[%s267 + $0xa8] sm:$0xff]
        %v1934 = vld [vmem:[%s267 + $0xb0] sm:$0xff]
        %v1935 = vld [vmem:[%s267 + $0xb8] sm:$0xff]
        %v1936 = vld [vmem:[%s267 + $0xc0] sm:$0xff]
        %v1937 = vld [vmem:[%s267 + $0xc8] sm:$0xff]
        %v1938 = vld [vmem:[%s267 + $0xd0] sm:$0xff]
        %v1939 = vld [vmem:[%s267 + $0xd8] sm:$0xff]
        %v1940 = vld [vmem:[%s267 + $0xe0] sm:$0xff]
        %v1941 = vld [vmem:[%s267 + $0xe8] sm:$0xff]
        %v1942 = vld [vmem:[%s267 + $0xf0] sm:$0xff]
        %v1943 = vld [vmem:[%s267 + $0xf8] sm:$0xff]
        %v1944 = vld [vmem:[%s267 + $0x100] sm:$0xff]
        %v1945 = vld [vmem:[%s267 + $0x108] sm:$0xff]
        %v1946 = vld [vmem:[%s267 + $0x110] sm:$0xff]
        %v1947 = vld [vmem:[%s267 + $0x118] sm:$0xff]
        %v1948 = vld [vmem:[%s267 + $0x120] sm:$0xff]
        %v1949 = vld [vmem:[%s267 + $0x128] sm:$0xff]
        %v1950 = vld [vmem:[%s267 + $0x130] sm:$0xff]
        %v1951 = vld [vmem:[%s267 + $0x138] sm:$0xff]
        %v1952 = vld [vmem:[%s267 + $0x140] sm:$0xff]
        %v1953 = vld [vmem:[%s267 + $0x148] sm:$0xff]
        %v1954 = vld [vmem:[%s267 + $0x150] sm:$0xff]
        %v1955 = vld [vmem:[%s267 + $0x158] sm:$0xff]
        %v1956 = vld [vmem:[%s267 + $0x160] sm:$0xff]
        %v1957 = vld [vmem:[%s267 + $0x168] sm:$0xff]
        %v1958 = vld [vmem:[%s267 + $0x170] sm:$0xff]
        %v1959 = vld [vmem:[%s267 + $0x178] sm:$0xff]
        %v1960 = vld [vmem:[%s267 + $0x180] sm:$0xff]
        %v1961 = vld [vmem:[%s267 + $0x188] sm:$0xff]
        %v1962 = vld [vmem:[%s267 + $0x190] sm:$0xff]
        %v1963 = vld [vmem:[%s267 + $0x198] sm:$0xff]
        %v1964 = vld [vmem:[%s267 + $0x1a0] sm:$0xff]
        %v1965 = vld [vmem:[%s267 + $0x1a8] sm:$0xff]
        %v1966 = vld [vmem:[%s267 + $0x1b0] sm:$0xff]
        %v1967 = vld [vmem:[%s267 + $0x1b8] sm:$0xff]
        %v1968 = vld [vmem:[%s267 + $0x1c0] sm:$0xff]
        %v1969 = vld [vmem:[%s267 + $0x1c8] sm:$0xff]
        %v1970 = vld [vmem:[%s267 + $0x1d0] sm:$0xff]
        %v1971 = vld [vmem:[%s267 + $0x1d8] sm:$0xff]
        %v1972 = vld [vmem:[%s267 + $0x1e0] sm:$0xff]
        %v1973 = vld [vmem:[%s267 + $0x1e8] sm:$0xff]
        %v1974 = vld [vmem:[%s267 + $0x1f0] sm:$0xff]
        %v1975 = vld [vmem:[%s267 + $0x1f8] sm:$0xff]
        %v1976 = vpack.c.bf16 %v1914, %v1912
        %v1977 = vpack.c.bf16 %v1915, %v1913
        %v1978 = vpack.c.bf16 %v1918, %v1916
        %v1979 = vpack.c.bf16 %v1919, %v1917
        %v1980 = vpack.c.bf16 %v1922, %v1920
        %v1981 = vpack.c.bf16 %v1923, %v1921
        %v1982 = vpack.c.bf16 %v1926, %v1924
        %v1983 = vpack.c.bf16 %v1927, %v1925
        %v1984 = vpack.c.bf16 %v1930, %v1928
        %v1985 = vpack.c.bf16 %v1931, %v1929
        %v1986 = vpack.c.bf16 %v1934, %v1932
        %v1987 = vpack.c.bf16 %v1935, %v1933
        %v1988 = vpack.c.bf16 %v1938, %v1936
        %v1989 = vpack.c.bf16 %v1939, %v1937
        %v1990 = vpack.c.bf16 %v1942, %v1940
        %v1991 = vpack.c.bf16 %v1943, %v1941
        %v1992 = vpack.c.bf16 %v1946, %v1944
        %v1993 = vpack.c.bf16 %v1947, %v1945
        %v1994 = vpack.c.bf16 %v1950, %v1948
        %v1995 = vpack.c.bf16 %v1951, %v1949
        %v1996 = vpack.c.bf16 %v1954, %v1952
        %v1997 = vpack.c.bf16 %v1955, %v1953
        %v1998 = vpack.c.bf16 %v1958, %v1956
        %v1999 = vpack.c.bf16 %v1959, %v1957
        %v2000 = vpack.c.bf16 %v1962, %v1960
        %v2001 = vpack.c.bf16 %v1963, %v1961
        %v2002 = vpack.c.bf16 %v1966, %v1964
        %v2003 = vpack.c.bf16 %v1967, %v1965
        %v2004 = vpack.c.bf16 %v1970, %v1968
        %v2005 = vpack.c.bf16 %v1971, %v1969
        %v2006 = vpack.c.bf16 %v1974, %v1972
        %v2007 = vpack.c.bf16 %v1975, %v1973
        %2008 = vmatprep.subr.bf16.mxu0 %v1977
        %2009 = vmatpush1.bf16.msra.mxu0 %v1976
        %2010 = vmatprep.subr.bf16.mxu0 %v1979
        %2011 = vmatpush1.bf16.msra.mxu0 %v1978
        %2012 = vmatprep.subr.bf16.mxu0 %v1981
        %2013 = vmatpush1.bf16.msra.mxu0 %v1980
        %2014 = vmatprep.subr.bf16.mxu0 %v1983
        %2015 = vmatpush1.bf16.msra.mxu0 %v1982
        %2016 = vmatprep.subr.bf16.mxu0 %v1985
        %2017 = vmatpush1.bf16.msra.mxu0 %v1984
        %2018 = vmatprep.subr.bf16.mxu0 %v1987
        %2019 = vmatpush1.bf16.msra.mxu0 %v1986
        %2020 = vmatprep.subr.bf16.mxu0 %v1989
        %2021 = vmatpush1.bf16.msra.mxu0 %v1988
        %2022 = vmatprep.subr.bf16.mxu0 %v1991
        %2023 = vmatpush1.bf16.msra.mxu0 %v1990
        %2024 = vmatprep.subr.bf16.mxu0 %v1993
        %2025 = vmatpush1.bf16.msra.mxu0 %v1992
        %2026 = vmatprep.subr.bf16.mxu0 %v1995
        %2027 = vmatpush1.bf16.msra.mxu0 %v1994
        %2028 = vmatprep.subr.bf16.mxu0 %v1997
        %2029 = vmatpush1.bf16.msra.mxu0 %v1996
        %2030 = vmatprep.subr.bf16.mxu0 %v1999
        %2031 = vmatpush1.bf16.msra.mxu0 %v1998
        %2032 = vmatprep.subr.bf16.mxu0 %v2001
        %2033 = vmatpush1.bf16.msra.mxu0 %v2000
        %2034 = vmatprep.subr.bf16.mxu0 %v2003
        %2035 = vmatpush1.bf16.msra.mxu0 %v2002
        %2036 = vmatprep.subr.bf16.mxu0 %v2005
        %2037 = vmatpush1.bf16.msra.mxu0 %v2004
        %2038 = vmatprep.subr.bf16.mxu0 %v2007
        %2039 = vmatpush1.bf16.msra.mxu0 %v2006
        %2040 = vmatprep.mubr.bf16.mxu0 %v1881
        %2041 = vmatmul.mubr.bf16.gmra.mrb[0].mxu0 %v1880
        %v2042 = vpop.f32.mrb[0].mxu0
        %v2043 = vadd.f32 0.0, %v2042
        %v2044 = vpop.f32.mrb[0].mxu0
        %v2045 = vadd.f32 0.0, %v2044
        %v2046 = vpop.f32.mrb[0].mxu0
        %v2047 = vadd.f32 0.0, %v2046
        %v2048 = vpop.f32.mrb[0].mxu0
        %v2049 = vadd.f32 0.0, %v2048
        %2050 = vmatprep.mubr.bf16.mxu0 %v1883
        %2051 = vmatmul.mubr.bf16.gmra.mrb[0].mxu0 %v1882
        %v2052 = vpop.f32.mrb[0].mxu0
        %v2053 = vadd.f32 0.0, %v2052
        %v2054 = vpop.f32.mrb[0].mxu0
        %v2055 = vadd.f32 0.0, %v2054
        %v2056 = vpop.f32.mrb[0].mxu0
        %v2057 = vadd.f32 0.0, %v2056
        %v2058 = vpop.f32.mrb[0].mxu0
        %v2059 = vadd.f32 0.0, %v2058
        %2060 = vmatprep.mubr.bf16.mxu0 %v1885
        %2061 = vmatmul.mubr.bf16.gmra.mrb[0].mxu0 %v1884
        %v2062 = vpop.f32.mrb[0].mxu0
        %v2063 = vadd.f32 0.0, %v2062
        %v2064 = vpop.f32.mrb[0].mxu0
        %v2065 = vadd.f32 0.0, %v2064
        %v2066 = vpop.f32.mrb[0].mxu0
        %v2067 = vadd.f32 0.0, %v2066
        %v2068 = vpop.f32.mrb[0].mxu0
        %v2069 = vadd.f32 0.0, %v2068
        %2070 = vmatprep.mubr.bf16.mxu0 %v1887
        %2071 = vmatmul.mubr.bf16.gmra.mrb[0].mxu0 %v1886
        %v2072 = vpop.f32.mrb[0].mxu0
        %v2073 = vadd.f32 0.0, %v2072
        %v2074 = vpop.f32.mrb[0].mxu0
        %v2075 = vadd.f32 0.0, %v2074
        %v2076 = vpop.f32.mrb[0].mxu0
        %v2077 = vadd.f32 0.0, %v2076
        %v2078 = vpop.f32.mrb[0].mxu0
        %v2079 = vadd.f32 0.0, %v2078
        %2080 = vmatprep.mubr.bf16.mxu0 %v1889
        %2081 = vmatmul.mubr.bf16.gmra.mrb[0].mxu0 %v1888
        %v2082 = vpop.f32.mrb[0].mxu0
        %v2083 = vadd.f32 0.0, %v2082
        %v2084 = vpop.f32.mrb[0].mxu0
        %v2085 = vadd.f32 0.0, %v2084
        %v2086 = vpop.f32.mrb[0].mxu0
        %v2087 = vadd.f32 0.0, %v2086
        %v2088 = vpop.f32.mrb[0].mxu0
        %v2089 = vadd.f32 0.0, %v2088
        %2090 = vmatprep.mubr.bf16.mxu0 %v1891
        %2091 = vmatmul.mubr.bf16.gmra.mrb[0].mxu0 %v1890
        %v2092 = vpop.f32.mrb[0].mxu0
        %v2093 = vadd.f32 0.0, %v2092
        %v2094 = vpop.f32.mrb[0].mxu0
        %v2095 = vadd.f32 0.0, %v2094
        %v2096 = vpop.f32.mrb[0].mxu0
        %v2097 = vadd.f32 0.0, %v2096
        %v2098 = vpop.f32.mrb[0].mxu0
        %v2099 = vadd.f32 0.0, %v2098
        %2100 = vmatprep.mubr.bf16.mxu0 %v1893
        %2101 = vmatmul.mubr.bf16.gmra.mrb[0].mxu0 %v1892
        %v2102 = vpop.f32.mrb[0].mxu0
        %v2103 = vadd.f32 0.0, %v2102
        %v2104 = vpop.f32.mrb[0].mxu0
        %v2105 = vadd.f32 0.0, %v2104
        %v2106 = vpop.f32.mrb[0].mxu0
        %v2107 = vadd.f32 0.0, %v2106
        %v2108 = vpop.f32.mrb[0].mxu0
        %v2109 = vadd.f32 0.0, %v2108
        %2110 = vmatprep.mubr.bf16.mxu0 %v1895
        %2111 = vmatmul.mubr.bf16.gmra.mrb[0].mxu0 %v1894
        %v2112 = vpop.f32.mrb[0].mxu0
        %v2113 = vadd.f32 0.0, %v2112
        %v2114 = vpop.f32.mrb[0].mxu0
        %v2115 = vadd.f32 0.0, %v2114
        %v2116 = vpop.f32.mrb[0].mxu0
        %v2117 = vadd.f32 0.0, %v2116
        %v2118 = vpop.f32.mrb[0].mxu0
        %v2119 = vadd.f32 0.0, %v2118
        %2120 = vmatprep.mubr.bf16.mxu0 %v1897
        %2121 = vmatmul.mubr.bf16.gmra.mrb[0].mxu0 %v1896
        %v2122 = vpop.f32.mrb[0].mxu0
        %v2123 = vadd.f32 0.0, %v2122
        %v2124 = vpop.f32.mrb[0].mxu0
        %v2125 = vadd.f32 0.0, %v2124
        %v2126 = vpop.f32.mrb[0].mxu0
        %v2127 = vadd.f32 0.0, %v2126
        %v2128 = vpop.f32.mrb[0].mxu0
        %v2129 = vadd.f32 0.0, %v2128
        %2130 = vmatprep.mubr.bf16.mxu0 %v1899
        %2131 = vmatmul.mubr.bf16.gmra.mrb[0].mxu0 %v1898
        %v2132 = vpop.f32.mrb[0].mxu0
        %v2133 = vadd.f32 0.0, %v2132
        %v2134 = vpop.f32.mrb[0].mxu0
        %v2135 = vadd.f32 0.0, %v2134
        %v2136 = vpop.f32.mrb[0].mxu0
        %v2137 = vadd.f32 0.0, %v2136
        %v2138 = vpop.f32.mrb[0].mxu0
        %v2139 = vadd.f32 0.0, %v2138
        %2140 = vmatprep.mubr.bf16.mxu0 %v1901
        %2141 = vmatmul.mubr.bf16.gmra.mrb[0].mxu0 %v1900
        %v2142 = vpop.f32.mrb[0].mxu0
        %v2143 = vadd.f32 0.0, %v2142
        %v2144 = vpop.f32.mrb[0].mxu0
        %v2145 = vadd.f32 0.0, %v2144
        %v2146 = vpop.f32.mrb[0].mxu0
        %v2147 = vadd.f32 0.0, %v2146
        %v2148 = vpop.f32.mrb[0].mxu0
        %v2149 = vadd.f32 0.0, %v2148
        %2150 = vmatprep.mubr.bf16.mxu0 %v1903
        %2151 = vmatmul.mubr.bf16.gmra.mrb[0].mxu0 %v1902
        %v2152 = vpop.f32.mrb[0].mxu0
        %v2153 = vadd.f32 0.0, %v2152
        %v2154 = vpop.f32.mrb[0].mxu0
        %v2155 = vadd.f32 0.0, %v2154
        %v2156 = vpop.f32.mrb[0].mxu0
        %v2157 = vadd.f32 0.0, %v2156
        %v2158 = vpop.f32.mrb[0].mxu0
        %v2159 = vadd.f32 0.0, %v2158
        %2160 = vmatprep.mubr.bf16.mxu0 %v1905
        %2161 = vmatmul.mubr.bf16.gmra.mrb[0].mxu0 %v1904
        %v2162 = vpop.f32.mrb[0].mxu0
        %v2163 = vadd.f32 0.0, %v2162
        %v2164 = vpop.f32.mrb[0].mxu0
        %v2165 = vadd.f32 0.0, %v2164
        %v2166 = vpop.f32.mrb[0].mxu0
        %v2167 = vadd.f32 0.0, %v2166
        %v2168 = vpop.f32.mrb[0].mxu0
        %v2169 = vadd.f32 0.0, %v2168
        %2170 = vmatprep.mubr.bf16.mxu0 %v1907
        %2171 = vmatmul.mubr.bf16.gmra.mrb[0].mxu0 %v1906
        %v2172 = vpop.f32.mrb[0].mxu0
        %v2173 = vadd.f32 0.0, %v2172
        %v2174 = vpop.f32.mrb[0].mxu0
        %v2175 = vadd.f32 0.0, %v2174
        %v2176 = vpop.f32.mrb[0].mxu0
        %v2177 = vadd.f32 0.0, %v2176
        %v2178 = vpop.f32.mrb[0].mxu0
        %v2179 = vadd.f32 0.0, %v2178
        %2180 = vmatprep.mubr.bf16.mxu0 %v1909
        %2181 = vmatmul.mubr.bf16.gmra.mrb[0].mxu0 %v1908
        %v2182 = vpop.f32.mrb[0].mxu0
        %v2183 = vadd.f32 0.0, %v2182
        %v2184 = vpop.f32.mrb[0].mxu0
        %v2185 = vadd.f32 0.0, %v2184
        %v2186 = vpop.f32.mrb[0].mxu0
        %v2187 = vadd.f32 0.0, %v2186
        %v2188 = vpop.f32.mrb[0].mxu0
        %v2189 = vadd.f32 0.0, %v2188
        %2190 = vmatprep.mubr.bf16.mxu0 %v1911
        %2191 = vmatmul.mubr.bf16.gmra.mrb[0].mxu0 %v1910
        %v2192 = vpop.f32.mrb[0].mxu0
        %v2193 = vadd.f32 0.0, %v2192
        %v2194 = vpop.f32.mrb[0].mxu0
        %v2195 = vadd.f32 0.0, %v2194
        %v2196 = vpop.f32.mrb[0].mxu0
        %v2197 = vadd.f32 0.0, %v2196
        %v2198 = vpop.f32.mrb[0].mxu0
        %v2199 = vadd.f32 0.0, %v2198
        %2200 = vdwg.mxu0
        %v2201 = vadd.f32 %v1816, %v2043
        %v2202 = vadd.f32 %v1817, %v2045
        %v2203 = vadd.f32 %v1818, %v2047
        %v2204 = vadd.f32 %v1819, %v2049
        %v2205 = vadd.f32 %v1820, %v2053
        %v2206 = vadd.f32 %v1821, %v2055
        %v2207 = vadd.f32 %v1822, %v2057
        %v2208 = vadd.f32 %v1823, %v2059
        %v2209 = vadd.f32 %v1824, %v2063
        %v2210 = vadd.f32 %v1825, %v2065
        %v2211 = vadd.f32 %v1826, %v2067
        %v2212 = vadd.f32 %v1827, %v2069
        %v2213 = vadd.f32 %v1828, %v2073
        %v2214 = vadd.f32 %v1829, %v2075
        %v2215 = vadd.f32 %v1830, %v2077
        %v2216 = vadd.f32 %v1831, %v2079
        %v2217 = vadd.f32 %v1832, %v2083
        %v2218 = vadd.f32 %v1833, %v2085
        %v2219 = vadd.f32 %v1834, %v2087
        %v2220 = vadd.f32 %v1835, %v2089
        %v2221 = vadd.f32 %v1836, %v2093
        %v2222 = vadd.f32 %v1837, %v2095
        %v2223 = vadd.f32 %v1838, %v2097
        %v2224 = vadd.f32 %v1839, %v2099
        %v2225 = vadd.f32 %v1840, %v2103
        %v2226 = vadd.f32 %v1841, %v2105
        %v2227 = vadd.f32 %v1842, %v2107
        %v2228 = vadd.f32 %v1843, %v2109
        %v2229 = vadd.f32 %v1844, %v2113
        %v2230 = vadd.f32 %v1845, %v2115
        %v2231 = vadd.f32 %v1846, %v2117
        %v2232 = vadd.f32 %v1847, %v2119
        %v2233 = vadd.f32 %v1848, %v2123
        %v2234 = vadd.f32 %v1849, %v2125
        %v2235 = vadd.f32 %v1850, %v2127
        %v2236 = vadd.f32 %v1851, %v2129
        %v2237 = vadd.f32 %v1852, %v2133
        %v2238 = vadd.f32 %v1853, %v2135
        %v2239 = vadd.f32 %v1854, %v2137
        %v2240 = vadd.f32 %v1855, %v2139
        %v2241 = vadd.f32 %v1856, %v2143
        %v2242 = vadd.f32 %v1857, %v2145
        %v2243 = vadd.f32 %v1858, %v2147
        %v2244 = vadd.f32 %v1859, %v2149
        %v2245 = vadd.f32 %v1860, %v2153
        %v2246 = vadd.f32 %v1861, %v2155
        %v2247 = vadd.f32 %v1862, %v2157
        %v2248 = vadd.f32 %v1863, %v2159
        %v2249 = vadd.f32 %v1864, %v2163
        %v2250 = vadd.f32 %v1865, %v2165
        %v2251 = vadd.f32 %v1866, %v2167
        %v2252 = vadd.f32 %v1867, %v2169
        %v2253 = vadd.f32 %v1868, %v2173
        %v2254 = vadd.f32 %v1869, %v2175
        %v2255 = vadd.f32 %v1870, %v2177
        %v2256 = vadd.f32 %v1871, %v2179
        %v2257 = vadd.f32 %v1872, %v2183
        %v2258 = vadd.f32 %v1873, %v2185
        %v2259 = vadd.f32 %v1874, %v2187
        %v2260 = vadd.f32 %v1875, %v2189
        %v2261 = vadd.f32 %v1876, %v2193
        %v2262 = vadd.f32 %v1877, %v2195
        %v2263 = vadd.f32 %v1878, %v2197
        %v2264 = vadd.f32 %v1879, %v2199
        %2265 = vst [vmem:[#allocation4] sm:$0xff] %v2201
        %2266 = vst [vmem:[#allocation4 + $0x8] sm:$0xff] %v2202
        %2267 = vst [vmem:[#allocation4 + $0x10] sm:$0xff] %v2203
        %2268 = vst [vmem:[#allocation4 + $0x18] sm:$0xff] %v2204
        %2269 = vst [vmem:[#allocation4 + $0x20] sm:$0xff] %v2205
        %2270 = vst [vmem:[#allocation4 + $0x28] sm:$0xff] %v2206
        %2271 = vst [vmem:[#allocation4 + $0x30] sm:$0xff] %v2207
        %2272 = vst [vmem:[#allocation4 + $0x38] sm:$0xff] %v2208
        %2273 = vst [vmem:[#allocation4 + $0x40] sm:$0xff] %v2209
        %2274 = vst [vmem:[#allocation4 + $0x48] sm:$0xff] %v2210
        %2275 = vst [vmem:[#allocation4 + $0x50] sm:$0xff] %v2211
        %2276 = vst [vmem:[#allocation4 + $0x58] sm:$0xff] %v2212
        %2277 = vst [vmem:[#allocation4 + $0x60] sm:$0xff] %v2213
        %2278 = vst [vmem:[#allocation4 + $0x68] sm:$0xff] %v2214
        %2279 = vst [vmem:[#allocation4 + $0x70] sm:$0xff] %v2215
        %2280 = vst [vmem:[#allocation4 + $0x78] sm:$0xff] %v2216
        %2281 = vst [vmem:[#allocation4 + $0x80] sm:$0xff] %v2217
        %2282 = vst [vmem:[#allocation4 + $0x88] sm:$0xff] %v2218
        %2283 = vst [vmem:[#allocation4 + $0x90] sm:$0xff] %v2219
        %2284 = vst [vmem:[#allocation4 + $0x98] sm:$0xff] %v2220
        %2285 = vst [vmem:[#allocation4 + $0xa0] sm:$0xff] %v2221
        %2286 = vst [vmem:[#allocation4 + $0xa8] sm:$0xff] %v2222
        %2287 = vst [vmem:[#allocation4 + $0xb0] sm:$0xff] %v2223
        %2288 = vst [vmem:[#allocation4 + $0xb8] sm:$0xff] %v2224
        %2289 = vst [vmem:[#allocation4 + $0xc0] sm:$0xff] %v2225
        %2290 = vst [vmem:[#allocation4 + $0xc8] sm:$0xff] %v2226
        %2291 = vst [vmem:[#allocation4 + $0xd0] sm:$0xff] %v2227
        %2292 = vst [vmem:[#allocation4 + $0xd8] sm:$0xff] %v2228
        %2293 = vst [vmem:[#allocation4 + $0xe0] sm:$0xff] %v2229
        %2294 = vst [vmem:[#allocation4 + $0xe8] sm:$0xff] %v2230
        %2295 = vst [vmem:[#allocation4 + $0xf0] sm:$0xff] %v2231
        %2296 = vst [vmem:[#allocation4 + $0xf8] sm:$0xff] %v2232
        %2297 = vst [vmem:[#allocation4 + $0x100] sm:$0xff] %v2233
        %2298 = vst [vmem:[#allocation4 + $0x108] sm:$0xff] %v2234
        %2299 = vst [vmem:[#allocation4 + $0x110] sm:$0xff] %v2235
        %2300 = vst [vmem:[#allocation4 + $0x118] sm:$0xff] %v2236
        %2301 = vst [vmem:[#allocation4 + $0x120] sm:$0xff] %v2237
        %2302 = vst [vmem:[#allocation4 + $0x128] sm:$0xff] %v2238
        %2303 = vst [vmem:[#allocation4 + $0x130] sm:$0xff] %v2239
        %2304 = vst [vmem:[#allocation4 + $0x138] sm:$0xff] %v2240
        %2305 = vst [vmem:[#allocation4 + $0x140] sm:$0xff] %v2241
        %2306 = vst [vmem:[#allocation4 + $0x148] sm:$0xff] %v2242
        %2307 = vst [vmem:[#allocation4 + $0x150] sm:$0xff] %v2243
        %2308 = vst [vmem:[#allocation4 + $0x158] sm:$0xff] %v2244
        %2309 = vst [vmem:[#allocation4 + $0x160] sm:$0xff] %v2245
        %2310 = vst [vmem:[#allocation4 + $0x168] sm:$0xff] %v2246
        %2311 = vst [vmem:[#allocation4 + $0x170] sm:$0xff] %v2247
        %2312 = vst [vmem:[#allocation4 + $0x178] sm:$0xff] %v2248
        %2313 = vst [vmem:[#allocation4 + $0x180] sm:$0xff] %v2249
        %2314 = vst [vmem:[#allocation4 + $0x188] sm:$0xff] %v2250
        %2315 = vst [vmem:[#allocation4 + $0x190] sm:$0xff] %v2251
        %2316 = vst [vmem:[#allocation4 + $0x198] sm:$0xff] %v2252
        %2317 = vst [vmem:[#allocation4 + $0x1a0] sm:$0xff] %v2253
        %2318 = vst [vmem:[#allocation4 + $0x1a8] sm:$0xff] %v2254
        %2319 = vst [vmem:[#allocation4 + $0x1b0] sm:$0xff] %v2255
        %2320 = vst [vmem:[#allocation4 + $0x1b8] sm:$0xff] %v2256
        %2321 = vst [vmem:[#allocation4 + $0x1c0] sm:$0xff] %v2257
        %2322 = vst [vmem:[#allocation4 + $0x1c8] sm:$0xff] %v2258
        %2323 = vst [vmem:[#allocation4 + $0x1d0] sm:$0xff] %v2259
        %2324 = vst [vmem:[#allocation4 + $0x1d8] sm:$0xff] %v2260
        %2325 = vst [vmem:[#allocation4 + $0x1e0] sm:$0xff] %v2261
        %2326 = vst [vmem:[#allocation4 + $0x1e8] sm:$0xff] %v2262
        %2327 = vst [vmem:[#allocation4 + $0x1f0] sm:$0xff] %v2263
        %2328 = vst [vmem:[#allocation4 + $0x1f8] sm:$0xff] %v2264
        %2329 = vst.msk [vmem:[#allocation2] sm:$0xff] %vm1559, %v887
        %2330 = vst.msk [vmem:[#allocation2 + $0x8] sm:$0xff] %vm1559, %v888
        %2331 = vst.msk [vmem:[#allocation2 + $0x10] sm:$0xff] %vm1559, %v889
        %2332 = vst.msk [vmem:[#allocation2 + $0x18] sm:$0xff] %vm1559, %v890
        %2333 = vst.msk [vmem:[#allocation2 + $0x20] sm:$0xff] %vm1559, %v891
        %2334 = vst.msk [vmem:[#allocation2 + $0x28] sm:$0xff] %vm1559, %v892
        %2335 = vst.msk [vmem:[#allocation2 + $0x30] sm:$0xff] %vm1559, %v893
        %2336 = vst.msk [vmem:[#allocation2 + $0x38] sm:$0xff] %vm1559, %v894
        %2337 = vst.msk [vmem:[#allocation2 + $0x40] sm:$0xff] %vm1559, %v895
        %2338 = vst.msk [vmem:[#allocation2 + $0x48] sm:$0xff] %vm1559, %v896
        %2339 = vst.msk [vmem:[#allocation2 + $0x50] sm:$0xff] %vm1559, %v897
        %2340 = vst.msk [vmem:[#allocation2 + $0x58] sm:$0xff] %vm1559, %v898
        %2341 = vst.msk [vmem:[#allocation2 + $0x60] sm:$0xff] %vm1559, %v899
        %2342 = vst.msk [vmem:[#allocation2 + $0x68] sm:$0xff] %vm1559, %v900
        %2343 = vst.msk [vmem:[#allocation2 + $0x70] sm:$0xff] %vm1559, %v901
        %2344 = vst.msk [vmem:[#allocation2 + $0x78] sm:$0xff] %vm1559, %v902
        %2345 = vst.msk [vmem:[#allocation2 + $0x80] sm:$0xff] %vm1559, %v903
        %2346 = vst.msk [vmem:[#allocation2 + $0x88] sm:$0xff] %vm1559, %v904
        %2347 = vst.msk [vmem:[#allocation2 + $0x90] sm:$0xff] %vm1559, %v905
        %2348 = vst.msk [vmem:[#allocation2 + $0x98] sm:$0xff] %vm1559, %v906
        %2349 = vst.msk [vmem:[#allocation2 + $0xa0] sm:$0xff] %vm1559, %v907
        %2350 = vst.msk [vmem:[#allocation2 + $0xa8] sm:$0xff] %vm1559, %v908
        %2351 = vst.msk [vmem:[#allocation2 + $0xb0] sm:$0xff] %vm1559, %v909
        %2352 = vst.msk [vmem:[#allocation2 + $0xb8] sm:$0xff] %vm1559, %v910
        %2353 = vst.msk [vmem:[#allocation2 + $0xc0] sm:$0xff] %vm1559, %v911
        %2354 = vst.msk [vmem:[#allocation2 + $0xc8] sm:$0xff] %vm1559, %v912
        %2355 = vst.msk [vmem:[#allocation2 + $0xd0] sm:$0xff] %vm1559, %v913
        %2356 = vst.msk [vmem:[#allocation2 + $0xd8] sm:$0xff] %vm1559, %v914
        %2357 = vst.msk [vmem:[#allocation2 + $0xe0] sm:$0xff] %vm1559, %v915
        %2358 = vst.msk [vmem:[#allocation2 + $0xe8] sm:$0xff] %vm1559, %v916
        %2359 = vst.msk [vmem:[#allocation2 + $0xf0] sm:$0xff] %vm1559, %v917
        %2360 = vst.msk [vmem:[#allocation2 + $0xf8] sm:$0xff] %vm1559, %v918
        %p2361 = scmp.eq.s32.totalorder %s30, 1
        // Predicated region
        $region49: #{tpu_custom_call.1} parent=31 // pred_check
          %p2362 = pneg %p2361
        $region50: #{tpu_custom_call.1} parent=31 // pred_check_branch
          %2364 = sbr.rel (%p2362) target = $region52
        $region51: #{tpu_custom_call.1} parent=31 // pred_region
          %v2365 = vld [vmem:[#allocation3] sm:$0xff]
          %v2366 = vld [vmem:[#allocation3 + $0x8] sm:$0xff]
          %v2367 = vld [vmem:[#allocation3 + $0x10] sm:$0xff]
          %v2368 = vld [vmem:[#allocation3 + $0x18] sm:$0xff]
          %v2369 = vld [vmem:[#allocation3 + $0x20] sm:$0xff]
          %v2370 = vld [vmem:[#allocation3 + $0x28] sm:$0xff]
          %v2371 = vld [vmem:[#allocation3 + $0x30] sm:$0xff]
          %v2372 = vld [vmem:[#allocation3 + $0x38] sm:$0xff]
          %v2373 = vld [vmem:[#allocation3 + $0x40] sm:$0xff]
          %v2374 = vld [vmem:[#allocation3 + $0x48] sm:$0xff]
          %v2375 = vld [vmem:[#allocation3 + $0x50] sm:$0xff]
          %v2376 = vld [vmem:[#allocation3 + $0x58] sm:$0xff]
          %v2377 = vld [vmem:[#allocation3 + $0x60] sm:$0xff]
          %v2378 = vld [vmem:[#allocation3 + $0x68] sm:$0xff]
          %v2379 = vld [vmem:[#allocation3 + $0x70] sm:$0xff]
          %v2380 = vld [vmem:[#allocation3 + $0x78] sm:$0xff]
          %v2381 = vld [vmem:[#allocation3 + $0x80] sm:$0xff]
          %v2382 = vld [vmem:[#allocation3 + $0x88] sm:$0xff]
          %v2383 = vld [vmem:[#allocation3 + $0x90] sm:$0xff]
          %v2384 = vld [vmem:[#allocation3 + $0x98] sm:$0xff]
          %v2385 = vld [vmem:[#allocation3 + $0xa0] sm:$0xff]
          %v2386 = vld [vmem:[#allocation3 + $0xa8] sm:$0xff]
          %v2387 = vld [vmem:[#allocation3 + $0xb0] sm:$0xff]
          %v2388 = vld [vmem:[#allocation3 + $0xb8] sm:$0xff]
          %v2389 = vld [vmem:[#allocation3 + $0xc0] sm:$0xff]
          %v2390 = vld [vmem:[#allocation3 + $0xc8] sm:$0xff]
          %v2391 = vld [vmem:[#allocation3 + $0xd0] sm:$0xff]
          %v2392 = vld [vmem:[#allocation3 + $0xd8] sm:$0xff]
          %v2393 = vld [vmem:[#allocation3 + $0xe0] sm:$0xff]
          %v2394 = vld [vmem:[#allocation3 + $0xe8] sm:$0xff]
          %v2395 = vld [vmem:[#allocation3 + $0xf0] sm:$0xff]
          %v2396 = vld [vmem:[#allocation3 + $0xf8] sm:$0xff]
          %v2397 = vrcp.pop %v2365
          %v2398 = vrcp.pop %v2366
          %v2399 = vrcp.pop %v2367
          %v2400 = vrcp.pop %v2368
          %v2401 = vrcp.pop %v2369
          %v2402 = vrcp.pop %v2370
          %v2403 = vrcp.pop %v2371
          %v2404 = vrcp.pop %v2372
          %v2405 = vrcp.pop %v2373
          %v2406 = vrcp.pop %v2374
          %v2407 = vrcp.pop %v2375
          %v2408 = vrcp.pop %v2376
          %v2409 = vrcp.pop %v2377
          %v2410 = vrcp.pop %v2378
          %v2411 = vrcp.pop %v2379
          %v2412 = vrcp.pop %v2380
          %v2413 = vrcp.pop %v2381
          %v2414 = vrcp.pop %v2382
          %v2415 = vrcp.pop %v2383
          %v2416 = vrcp.pop %v2384
          %v2417 = vrcp.pop %v2385
          %v2418 = vrcp.pop %v2386
          %v2419 = vrcp.pop %v2387
          %v2420 = vrcp.pop %v2388
          %v2421 = vrcp.pop %v2389
          %v2422 = vrcp.pop %v2390
          %v2423 = vrcp.pop %v2391
          %v2424 = vrcp.pop %v2392
          %v2425 = vrcp.pop %v2393
          %v2426 = vrcp.pop %v2394
          %v2427 = vrcp.pop %v2395
          %v2428 = vrcp.pop %v2396
          %v2429 = vld [vmem:[#allocation4] sm:$0xff]
          %v2430 = vld [vmem:[#allocation4 + $0x8] sm:$0xff]
          %v2431 = vld [vmem:[#allocation4 + $0x10] sm:$0xff]
          %v2432 = vld [vmem:[#allocation4 + $0x18] sm:$0xff]
          %v2433 = vld [vmem:[#allocation4 + $0x20] sm:$0xff]
          %v2434 = vld [vmem:[#allocation4 + $0x28] sm:$0xff]
          %v2435 = vld [vmem:[#allocation4 + $0x30] sm:$0xff]
          %v2436 = vld [vmem:[#allocation4 + $0x38] sm:$0xff]
          %v2437 = vld [vmem:[#allocation4 + $0x40] sm:$0xff]
          %v2438 = vld [vmem:[#allocation4 + $0x48] sm:$0xff]
          %v2439 = vld [vmem:[#allocation4 + $0x50] sm:$0xff]
          %v2440 = vld [vmem:[#allocation4 + $0x58] sm:$0xff]
          %v2441 = vld [vmem:[#allocation4 + $0x60] sm:$0xff]
          %v2442 = vld [vmem:[#allocation4 + $0x68] sm:$0xff]
          %v2443 = vld [vmem:[#allocation4 + $0x70] sm:$0xff]
          %v2444 = vld [vmem:[#allocation4 + $0x78] sm:$0xff]
          %v2445 = vld [vmem:[#allocation4 + $0x80] sm:$0xff]
          %v2446 = vld [vmem:[#allocation4 + $0x88] sm:$0xff]
          %v2447 = vld [vmem:[#allocation4 + $0x90] sm:$0xff]
          %v2448 = vld [vmem:[#allocation4 + $0x98] sm:$0xff]
          %v2449 = vld [vmem:[#allocation4 + $0xa0] sm:$0xff]
          %v2450 = vld [vmem:[#allocation4 + $0xa8] sm:$0xff]
          %v2451 = vld [vmem:[#allocation4 + $0xb0] sm:$0xff]
          %v2452 = vld [vmem:[#allocation4 + $0xb8] sm:$0xff]
          %v2453 = vld [vmem:[#allocation4 + $0xc0] sm:$0xff]
          %v2454 = vld [vmem:[#allocation4 + $0xc8] sm:$0xff]
          %v2455 = vld [vmem:[#allocation4 + $0xd0] sm:$0xff]
          %v2456 = vld [vmem:[#allocation4 + $0xd8] sm:$0xff]
          %v2457 = vld [vmem:[#allocation4 + $0xe0] sm:$0xff]
          %v2458 = vld [vmem:[#allocation4 + $0xe8] sm:$0xff]
          %v2459 = vld [vmem:[#allocation4 + $0xf0] sm:$0xff]
          %v2460 = vld [vmem:[#allocation4 + $0xf8] sm:$0xff]
          %v2461 = vld [vmem:[#allocation4 + $0x100] sm:$0xff]
          %v2462 = vld [vmem:[#allocation4 + $0x108] sm:$0xff]
          %v2463 = vld [vmem:[#allocation4 + $0x110] sm:$0xff]
          %v2464 = vld [vmem:[#allocation4 + $0x118] sm:$0xff]
          %v2465 = vld [vmem:[#allocation4 + $0x120] sm:$0xff]
          %v2466 = vld [vmem:[#allocation4 + $0x128] sm:$0xff]
          %v2467 = vld [vmem:[#allocation4 + $0x130] sm:$0xff]
          %v2468 = vld [vmem:[#allocation4 + $0x138] sm:$0xff]
          %v2469 = vld [vmem:[#allocation4 + $0x140] sm:$0xff]
          %v2470 = vld [vmem:[#allocation4 + $0x148] sm:$0xff]
          %v2471 = vld [vmem:[#allocation4 + $0x150] sm:$0xff]
          %v2472 = vld [vmem:[#allocation4 + $0x158] sm:$0xff]
          %v2473 = vld [vmem:[#allocation4 + $0x160] sm:$0xff]
          %v2474 = vld [vmem:[#allocation4 + $0x168] sm:$0xff]
          %v2475 = vld [vmem:[#allocation4 + $0x170] sm:$0xff]
          %v2476 = vld [vmem:[#allocation4 + $0x178] sm:$0xff]
          %v2477 = vld [vmem:[#allocation4 + $0x180] sm:$0xff]
          %v2478 = vld [vmem:[#allocation4 + $0x188] sm:$0xff]
          %v2479 = vld [vmem:[#allocation4 + $0x190] sm:$0xff]
          %v2480 = vld [vmem:[#allocation4 + $0x198] sm:$0xff]
          %v2481 = vld [vmem:[#allocation4 + $0x1a0] sm:$0xff]
          %v2482 = vld [vmem:[#allocation4 + $0x1a8] sm:$0xff]
          %v2483 = vld [vmem:[#allocation4 + $0x1b0] sm:$0xff]
          %v2484 = vld [vmem:[#allocation4 + $0x1b8] sm:$0xff]
          %v2485 = vld [vmem:[#allocation4 + $0x1c0] sm:$0xff]
          %v2486 = vld [vmem:[#allocation4 + $0x1c8] sm:$0xff]
          %v2487 = vld [vmem:[#allocation4 + $0x1d0] sm:$0xff]
          %v2488 = vld [vmem:[#allocation4 + $0x1d8] sm:$0xff]
          %v2489 = vld [vmem:[#allocation4 + $0x1e0] sm:$0xff]
          %v2490 = vld [vmem:[#allocation4 + $0x1e8] sm:$0xff]
          %v2491 = vld [vmem:[#allocation4 + $0x1f0] sm:$0xff]
          %v2492 = vld [vmem:[#allocation4 + $0x1f8] sm:$0xff]
          %2494 = vset.pattern.permute.xlu0 0
          %2495 = vperm.xlu0 %2494, %v2397
          %v2496 = vpop.permute.xlu0 %2495
          %2499 = vset.pattern.permute.xlu0 0
          %2500 = vperm.xlu0 %2499, %v2398
          %v2501 = vpop.permute.xlu0 %2500
          %2504 = vset.pattern.permute.xlu0 0
          %2505 = vperm.xlu0 %2504, %v2399
          %v2506 = vpop.permute.xlu0 %2505
          %2509 = vset.pattern.permute.xlu0 0
          %2510 = vperm.xlu0 %2509, %v2400
          %v2511 = vpop.permute.xlu0 %2510
          %2514 = vset.pattern.permute.xlu0 0
          %2515 = vperm.xlu0 %2514, %v2401
          %v2516 = vpop.permute.xlu0 %2515
          %2519 = vset.pattern.permute.xlu0 0
          %2520 = vperm.xlu0 %2519, %v2402
          %v2521 = vpop.permute.xlu0 %2520
          %2524 = vset.pattern.permute.xlu0 0
          %2525 = vperm.xlu0 %2524, %v2403
          %v2526 = vpop.permute.xlu0 %2525
          %2529 = vset.pattern.permute.xlu0 0
          %2530 = vperm.xlu0 %2529, %v2404
          %v2531 = vpop.permute.xlu0 %2530
          %2534 = vset.pattern.permute.xlu0 0
          %2535 = vperm.xlu0 %2534, %v2405
          %v2536 = vpop.permute.xlu0 %2535
          %2539 = vset.pattern.permute.xlu0 0
          %2540 = vperm.xlu0 %2539, %v2406
          %v2541 = vpop.permute.xlu0 %2540
          %2544 = vset.pattern.permute.xlu0 0
          %2545 = vperm.xlu0 %2544, %v2407
          %v2546 = vpop.permute.xlu0 %2545
          %2549 = vset.pattern.permute.xlu0 0
          %2550 = vperm.xlu0 %2549, %v2408
          %v2551 = vpop.permute.xlu0 %2550
          %2554 = vset.pattern.permute.xlu0 0
          %2555 = vperm.xlu0 %2554, %v2409
          %v2556 = vpop.permute.xlu0 %2555
          %2559 = vset.pattern.permute.xlu0 0
          %2560 = vperm.xlu0 %2559, %v2410
          %v2561 = vpop.permute.xlu0 %2560
          %2564 = vset.pattern.permute.xlu0 0
          %2565 = vperm.xlu0 %2564, %v2411
          %v2566 = vpop.permute.xlu0 %2565
          %2569 = vset.pattern.permute.xlu0 0
          %2570 = vperm.xlu0 %2569, %v2412
          %v2571 = vpop.permute.xlu0 %2570
          %2574 = vset.pattern.permute.xlu0 0
          %2575 = vperm.xlu0 %2574, %v2413
          %v2576 = vpop.permute.xlu0 %2575
          %2579 = vset.pattern.permute.xlu0 0
          %2580 = vperm.xlu0 %2579, %v2414
          %v2581 = vpop.permute.xlu0 %2580
          %2584 = vset.pattern.permute.xlu0 0
          %2585 = vperm.xlu0 %2584, %v2415
          %v2586 = vpop.permute.xlu0 %2585
          %2589 = vset.pattern.permute.xlu0 0
          %2590 = vperm.xlu0 %2589, %v2416
          %v2591 = vpop.permute.xlu0 %2590
          %2594 = vset.pattern.permute.xlu0 0
          %2595 = vperm.xlu0 %2594, %v2417
          %v2596 = vpop.permute.xlu0 %2595
          %2599 = vset.pattern.permute.xlu0 0
          %2600 = vperm.xlu0 %2599, %v2418
          %v2601 = vpop.permute.xlu0 %2600
          %2604 = vset.pattern.permute.xlu0 0
          %2605 = vperm.xlu0 %2604, %v2419
          %v2606 = vpop.permute.xlu0 %2605
          %2609 = vset.pattern.permute.xlu0 0
          %2610 = vperm.xlu0 %2609, %v2420
          %v2611 = vpop.permute.xlu0 %2610
          %2614 = vset.pattern.permute.xlu0 0
          %2615 = vperm.xlu0 %2614, %v2421
          %v2616 = vpop.permute.xlu0 %2615
          %2619 = vset.pattern.permute.xlu0 0
          %2620 = vperm.xlu0 %2619, %v2422
          %v2621 = vpop.permute.xlu0 %2620
          %2624 = vset.pattern.permute.xlu0 0
          %2625 = vperm.xlu0 %2624, %v2423
          %v2626 = vpop.permute.xlu0 %2625
          %2629 = vset.pattern.permute.xlu0 0
          %2630 = vperm.xlu0 %2629, %v2424
          %v2631 = vpop.permute.xlu0 %2630
          %2634 = vset.pattern.permute.xlu0 0
          %2635 = vperm.xlu0 %2634, %v2425
          %v2636 = vpop.permute.xlu0 %2635
          %2639 = vset.pattern.permute.xlu0 0
          %2640 = vperm.xlu0 %2639, %v2426
          %v2641 = vpop.permute.xlu0 %2640
          %2644 = vset.pattern.permute.xlu0 0
          %2645 = vperm.xlu0 %2644, %v2427
          %v2646 = vpop.permute.xlu0 %2645
          %2649 = vset.pattern.permute.xlu0 0
          %2650 = vperm.xlu0 %2649, %v2428
          %v2651 = vpop.permute.xlu0 %2650
          %v2653 = vmul.f32 %v2429, %v2496
          %v2654 = vmul.f32 %v2430, %v2496
          %v2655 = vmul.f32 %v2431, %v2501
          %v2656 = vmul.f32 %v2432, %v2501
          %v2657 = vmul.f32 %v2433, %v2506
          %v2658 = vmul.f32 %v2434, %v2506
          %v2659 = vmul.f32 %v2435, %v2511
          %v2660 = vmul.f32 %v2436, %v2511
          %v2661 = vmul.f32 %v2437, %v2516
          %v2662 = vmul.f32 %v2438, %v2516
          %v2663 = vmul.f32 %v2439, %v2521
          %v2664 = vmul.f32 %v2440, %v2521
          %v2665 = vmul.f32 %v2441, %v2526
          %v2666 = vmul.f32 %v2442, %v2526
          %v2667 = vmul.f32 %v2443, %v2531
          %v2668 = vmul.f32 %v2444, %v2531
          %v2669 = vmul.f32 %v2445, %v2536
          %v2670 = vmul.f32 %v2446, %v2536
          %v2671 = vmul.f32 %v2447, %v2541
          %v2672 = vmul.f32 %v2448, %v2541
          %v2673 = vmul.f32 %v2449, %v2546
          %v2674 = vmul.f32 %v2450, %v2546
          %v2675 = vmul.f32 %v2451, %v2551
          %v2676 = vmul.f32 %v2452, %v2551
          %v2677 = vmul.f32 %v2453, %v2556
          %v2678 = vmul.f32 %v2454, %v2556
          %v2679 = vmul.f32 %v2455, %v2561
          %v2680 = vmul.f32 %v2456, %v2561
          %v2681 = vmul.f32 %v2457, %v2566
          %v2682 = vmul.f32 %v2458, %v2566
          %v2683 = vmul.f32 %v2459, %v2571
          %v2684 = vmul.f32 %v2460, %v2571
          %v2685 = vmul.f32 %v2461, %v2576
          %v2686 = vmul.f32 %v2462, %v2576
          %v2687 = vmul.f32 %v2463, %v2581
          %v2688 = vmul.f32 %v2464, %v2581
          %v2689 = vmul.f32 %v2465, %v2586
          %v2690 = vmul.f32 %v2466, %v2586
          %v2691 = vmul.f32 %v2467, %v2591
          %v2692 = vmul.f32 %v2468, %v2591
          %v2693 = vmul.f32 %v2469, %v2596
          %v2694 = vmul.f32 %v2470, %v2596
          %v2695 = vmul.f32 %v2471, %v2601
          %v2696 = vmul.f32 %v2472, %v2601
          %v2697 = vmul.f32 %v2473, %v2606
          %v2698 = vmul.f32 %v2474, %v2606
          %v2699 = vmul.f32 %v2475, %v2611
          %v2700 = vmul.f32 %v2476, %v2611
          %v2701 = vmul.f32 %v2477, %v2616
          %v2702 = vmul.f32 %v2478, %v2616
          %v2703 = vmul.f32 %v2479, %v2621
          %v2704 = vmul.f32 %v2480, %v2621
          %v2705 = vmul.f32 %v2481, %v2626
          %v2706 = vmul.f32 %v2482, %v2626
          %v2707 = vmul.f32 %v2483, %v2631
          %v2708 = vmul.f32 %v2484, %v2631
          %v2709 = vmul.f32 %v2485, %v2636
          %v2710 = vmul.f32 %v2486, %v2636
          %v2711 = vmul.f32 %v2487, %v2641
          %v2712 = vmul.f32 %v2488, %v2641
          %v2713 = vmul.f32 %v2489, %v2646
          %v2714 = vmul.f32 %v2490, %v2646
          %v2715 = vmul.f32 %v2491, %v2651
          %v2716 = vmul.f32 %v2492, %v2651
          %2717 = vst [vmem:[%s299] sm:$0xff] %v2653
          %2718 = vst [vmem:[%s299 + $0x8] sm:$0xff] %v2654
          %2719 = vst [vmem:[%s299 + $0x10] sm:$0xff] %v2655
          %2720 = vst [vmem:[%s299 + $0x18] sm:$0xff] %v2656
          %2721 = vst [vmem:[%s299 + $0x20] sm:$0xff] %v2657
          %2722 = vst [vmem:[%s299 + $0x28] sm:$0xff] %v2658
          %2723 = vst [vmem:[%s299 + $0x30] sm:$0xff] %v2659
          %2724 = vst [vmem:[%s299 + $0x38] sm:$0xff] %v2660
          %2725 = vst [vmem:[%s299 + $0x40] sm:$0xff] %v2661
          %2726 = vst [vmem:[%s299 + $0x48] sm:$0xff] %v2662
          %2727 = vst [vmem:[%s299 + $0x50] sm:$0xff] %v2663
          %2728 = vst [vmem:[%s299 + $0x58] sm:$0xff] %v2664
          %2729 = vst [vmem:[%s299 + $0x60] sm:$0xff] %v2665
          %2730 = vst [vmem:[%s299 + $0x68] sm:$0xff] %v2666
          %2731 = vst [vmem:[%s299 + $0x70] sm:$0xff] %v2667
          %2732 = vst [vmem:[%s299 + $0x78] sm:$0xff] %v2668
          %2733 = vst [vmem:[%s299 + $0x80] sm:$0xff] %v2669
          %2734 = vst [vmem:[%s299 + $0x88] sm:$0xff] %v2670
          %2735 = vst [vmem:[%s299 + $0x90] sm:$0xff] %v2671
          %2736 = vst [vmem:[%s299 + $0x98] sm:$0xff] %v2672
          %2737 = vst [vmem:[%s299 + $0xa0] sm:$0xff] %v2673
          %2738 = vst [vmem:[%s299 + $0xa8] sm:$0xff] %v2674
          %2739 = vst [vmem:[%s299 + $0xb0] sm:$0xff] %v2675
          %2740 = vst [vmem:[%s299 + $0xb8] sm:$0xff] %v2676
          %2741 = vst [vmem:[%s299 + $0xc0] sm:$0xff] %v2677
          %2742 = vst [vmem:[%s299 + $0xc8] sm:$0xff] %v2678
          %2743 = vst [vmem:[%s299 + $0xd0] sm:$0xff] %v2679
          %2744 = vst [vmem:[%s299 + $0xd8] sm:$0xff] %v2680
          %2745 = vst [vmem:[%s299 + $0xe0] sm:$0xff] %v2681
          %2746 = vst [vmem:[%s299 + $0xe8] sm:$0xff] %v2682
          %2747 = vst [vmem:[%s299 + $0xf0] sm:$0xff] %v2683
          %2748 = vst [vmem:[%s299 + $0xf8] sm:$0xff] %v2684
          %2749 = vst [vmem:[%s299 + $0x100] sm:$0xff] %v2685
          %2750 = vst [vmem:[%s299 + $0x108] sm:$0xff] %v2686
          %2751 = vst [vmem:[%s299 + $0x110] sm:$0xff] %v2687
          %2752 = vst [vmem:[%s299 + $0x118] sm:$0xff] %v2688
          %2753 = vst [vmem:[%s299 + $0x120] sm:$0xff] %v2689
          %2754 = vst [vmem:[%s299 + $0x128] sm:$0xff] %v2690
          %2755 = vst [vmem:[%s299 + $0x130] sm:$0xff] %v2691
          %2756 = vst [vmem:[%s299 + $0x138] sm:$0xff] %v2692
          %2757 = vst [vmem:[%s299 + $0x140] sm:$0xff] %v2693
          %2758 = vst [vmem:[%s299 + $0x148] sm:$0xff] %v2694
          %2759 = vst [vmem:[%s299 + $0x150] sm:$0xff] %v2695
          %2760 = vst [vmem:[%s299 + $0x158] sm:$0xff] %v2696
          %2761 = vst [vmem:[%s299 + $0x160] sm:$0xff] %v2697
          %2762 = vst [vmem:[%s299 + $0x168] sm:$0xff] %v2698
          %2763 = vst [vmem:[%s299 + $0x170] sm:$0xff] %v2699
          %2764 = vst [vmem:[%s299 + $0x178] sm:$0xff] %v2700
          %2765 = vst [vmem:[%s299 + $0x180] sm:$0xff] %v2701
          %2766 = vst [vmem:[%s299 + $0x188] sm:$0xff] %v2702
          %2767 = vst [vmem:[%s299 + $0x190] sm:$0xff] %v2703
          %2768 = vst [vmem:[%s299 + $0x198] sm:$0xff] %v2704
          %2769 = vst [vmem:[%s299 + $0x1a0] sm:$0xff] %v2705
          %2770 = vst [vmem:[%s299 + $0x1a8] sm:$0xff] %v2706
          %2771 = vst [vmem:[%s299 + $0x1b0] sm:$0xff] %v2707
          %2772 = vst [vmem:[%s299 + $0x1b8] sm:$0xff] %v2708
          %2773 = vst [vmem:[%s299 + $0x1c0] sm:$0xff] %v2709
          %2774 = vst [vmem:[%s299 + $0x1c8] sm:$0xff] %v2710
          %2775 = vst [vmem:[%s299 + $0x1d0] sm:$0xff] %v2711
          %2776 = vst [vmem:[%s299 + $0x1d8] sm:$0xff] %v2712
          %2777 = vst [vmem:[%s299 + $0x1e0] sm:$0xff] %v2713
          %2778 = vst [vmem:[%s299 + $0x1e8] sm:$0xff] %v2714
          %2779 = vst [vmem:[%s299 + $0x1f0] sm:$0xff] %v2715
          %2780 = vst [vmem:[%s299 + $0x1f8] sm:$0xff] %v2716
        $region52: #{tpu_custom_call.1} parent=31 // pred_fallthru
          _
        %s2781 = sand.u32 %s136, 1
        %s2782 = scalar_lea.sflag [#allocation7], %s2781
        %s2783 = sand.u32 %s136, 1
        %s2784 = smul.addr %s2783, 512
        %s2785 = scalar_lea.vmem [#allocation11], %s2784
        // Predicated region
        $region53: #{tpu_custom_call.1} parent=31 // pred_check
          %p2786 = pneg %p146
        $region54: #{tpu_custom_call.1} parent=31 // pred_check_branch
          %2788 = sbr.rel (%p2786) target = $region56
        $region55: #{tpu_custom_call.1} parent=31 // pred_region
          %s2789 = smul.u32 32, %s29
          %s2791 = ssub.s32 8192, 8192
          %2792 = vsyncadd %s2782, %s2791
          %s2793 = smul.addr %s2789, 2
          %s2794 = smul.addr %s28, 128
          %s2795 = sadd.s32 %s2793, %s2794
          %s2796 = smul.addr %s2795, 128
          %s2797 = scalar_lea.hbm %s3, %s2796
          %s2798 = sshll.u32 %s2785, 4
          %s2799 = int_to_ptr.vmem [resolvable:$true] %s2798
          %2804 = dma.vmem_to_hbm [thread:$0]  %s2799, 8192, %s2797, %s2782, 256, 256, 16
        $region56: #{tpu_custom_call.1} parent=31 // pred_fallthru
          _
      $region32: #{tpu_custom_call.1} parent=5 // pred_fallthru
        _
      %p2805 = scmp.le.s32.totalorder 2, %s18
      // Predicated region
      $region57: #{tpu_custom_call.1} parent=5 // pred_check
        %p2806 = pneg %p2805
      $region58: #{tpu_custom_call.1} parent=5 // pred_check_branch
        %2808 = sbr.rel (%p2806) target = $region60
      $region59: #{tpu_custom_call.1} parent=5 // pred_region
        %s2809 = ssub.s32 %s18, 2
        // Predicated region
        $region61: #{tpu_custom_call.1} parent=59 // pred_check
          %p2810 = pneg %p152
        $region62: #{tpu_custom_call.1} parent=59 // pred_check_branch
          %2812 = sbr.rel (%p2810) target = $region64
        $region63: #{tpu_custom_call.1} parent=59 // pred_region
          %s2813 = sand.u32 %s137, 1
          %s2814 = scalar_lea.sflag [#allocation7], %s2813
          %s2815 = sand.u32 %s137, 1
          %s2816 = smul.addr %s2815, 512
          %s2817 = scalar_lea.vmem [#allocation11], %s2816
          %2818 = dma.done %s2814, 8192
        $region64: #{tpu_custom_call.1} parent=59 // pred_fallthru
          _
      $region60: #{tpu_custom_call.1} parent=5 // pred_fallthru
        _
    $region6: #{tpu_custom_call.1} parent=1 // loop_footer
      %s22 = sadd.s32 1, %s18
    $region7: #{tpu_custom_call.1} parent=1 // loop_footer_branch
      %17 = sbr.rel target = $region3
    $region8: #{tpu_custom_call.1} parent=1 // loop_exit
      _
    %2819 = vsyncpa [#allocation6], 1
    %s2820 = scalar_lea.sflag [#allocation6], 1
    %2821 = vsyncpa %s2820, 1
    %2822 = vsyncpa [#allocation9], 1
    %s2823 = scalar_lea.sflag [#allocation9], 1
    %2824 = vsyncpa %s2823, 1
    %2825 = vsyncpa [#allocation7], 1
    %s2826 = scalar_lea.sflag [#allocation7], 1
    %2827 = vsyncpa %s2826, 1

</llo_original>
